<compile_context>
chip_gen: v7x
topology: tpu7x:2x2x1
jax: 0.10.0
libtpu: 0.0.40
codegen_flags: <defaults>
</compile_context>

<pallas_src>
import functools
import math

import jax
import jax.numpy as jnp
from jax import lax
from jax.experimental import pallas as pl
from jax.experimental.pallas import tpu as pltpu


def _round_up(x: int, m: int) -> int:
    return (x + m - 1) // m * m


_INV_SQRT2 = 1.0 / math.sqrt(2.0)
_NEG_BIG = -1e30  # "minus infinity" for padded vocab lanes (finite -> no inf-inf)


# --------------------------------------------------------------------------- #
# Kernel
# --------------------------------------------------------------------------- #
def _ffnn_kernel(x_ref, w1_ref, b1_ref, w2_ref, b2_ref, out_ref):
    # ---- Linear 1: bf16 operands on the MXU, f32 accumulation, f32 bias ----
    h = jnp.dot(x_ref[...], w1_ref[...], preferred_element_type=jnp.float32)
    h = h + b1_ref[...]

    # ---- GELU (exact, erf-based: matches torch.nn.GELU default), f32 ----
    h = 0.5 * h * (1.0 + lax.erf(h * _INV_SQRT2))

    # ---- Dropout: identity in eval mode ----
    # TODO(synk): training-mode dropout (inverted-scaling mask via pltpu.prng_*).

    # ---- Linear 2: bf16 operands, f32 accumulation, f32 bias ----
    logits = jnp.dot(h.astype(jnp.bfloat16), w2_ref[...],
                     preferred_element_type=jnp.float32)
    logits = logits + b2_ref[...]

    # ---- LogSoftmax over the (padded) vocab axis, numerically stable, f32 ----
    # Padded vocab lanes carry a -1e30 bias: never win the max, exp() underflows
    # to exactly 0, so the LSE over real lanes is untouched.
    m = jnp.max(logits, axis=1, keepdims=True)
    shifted = logits - m
    lse = jnp.log(jnp.sum(jnp.exp(shifted), axis=1, keepdims=True))
    out_ref[...] = (shifted - lse).astype(out_ref.dtype)


# --------------------------------------------------------------------------- #
# One-time parameter preparation (hoisted out of the per-call path)
# --------------------------------------------------------------------------- #
def prepare_ffnn_params(w1, b1, w2, b2):
    """Pad to lane-dense shapes and cast MXU operands to bf16 ONCE at init.

    Returns ((w1_p, b1_p, w2_p, b2_p), vocab_size).
    """
    d_in, hidden = w1.shape
    vocab = w2.shape[1]
    d_in_p = _round_up(d_in, 128)
    hidden_p = _round_up(hidden, 128)
    vocab_p = _round_up(vocab, 128)

    w1_p = jnp.zeros((d_in_p, hidden_p), jnp.bfloat16).at[:d_in, :hidden].set(
        w1.astype(jnp.bfloat16))
    b1_p = jnp.zeros((1, hidden_p), jnp.float32).at[:, :hidden].set(
        jnp.reshape(b1, (1, -1)).astype(jnp.float32))
    w2_p = jnp.zeros((hidden_p, vocab_p), jnp.bfloat16).at[:hidden, :vocab].set(
        w2.astype(jnp.bfloat16))
    # Padded vocab lanes get a huge negative bias so they vanish in log-softmax.
    b2_p = jnp.full((1, vocab_p), _NEG_BIG, jnp.float32).at[:, :vocab].set(
        jnp.reshape(b2, (1, -1)).astype(jnp.float32))
    return (w1_p, b1_p, w2_p, b2_p), vocab


# --------------------------------------------------------------------------- #
# VMEM / tile planning (generation-aware, honest accounting)
# --------------------------------------------------------------------------- #
def _vmem_capacity_bytes() -> int:
    try:
        return int(pltpu.get_tpu_info().vmem_capacity_bytes)
    except Exception:
        return 64 << 20  # conservative: v7x per-TensorCore VMEM


def _vmem_footprint(block_m, d_in_p, hidden_p, vocab_p, out_itemsize,
                    buffered_weights) -> int:
    # Honest accounting: plain BlockSpec inputs are double-buffered by Pallas;
    # with pl.Buffered(1) the constant-index weights get a single buffer.
    wbuf = 1 if buffered_weights else 2
    weights = (d_in_p * hidden_p * 2 + hidden_p * 4
               + hidden_p * vocab_p * 2 + vocab_p * 4)
    return (2 * block_m * d_in_p * 2               # x tile (bf16), double-buffered
            + wbuf * weights                       # resident weights / biases
            + 2 * block_m * vocab_p * out_itemsize # out tile, double-buffered
            + block_m * hidden_p * 4               # live f32 hidden activations
            + block_m * vocab_p * 4)               # live f32 logits


def _plan(batch, d_in_p, hidden_p, vocab_p, out_dtype, buffered_weights):
    out_itemsize = jnp.dtype(out_dtype).itemsize
    budget = int(0.75 * _vmem_capacity_bytes())     # generation-aware cap
    kind = jax.devices()[0].device_kind.lower()
    is_v7 = ("v7" in kind) or ("7x" in kind)
    wide_mxu = ("v6" in kind) or is_v7

    # 256-row tiles for the 256-wide MXUs on v6e/v7x; 128 matches v5e.
    block_m = 256 if wide_mxu else 128
    block_m = max(128, min(block_m, _round_up(batch, 128)))

    # v7x: keep >=2 grid steps (when the batch allows) so the "parallel" batch
    # axis can actually shard across both TensorCores.
    if is_v7 and block_m > 128 and _round_up(batch, 128) // 128 >= 2:
        if _round_up(batch, block_m) // block_m < 2:
            block_m = 128

    # Gate the tile bump on the real VMEM footprint.
    while block_m > 128 and _vmem_footprint(block_m, d_in_p, hidden_p, vocab_p,
                                            out_itemsize, buffered_weights) > budget:
        block_m //= 2

    footprint = _vmem_footprint(block_m, d_in_p, hidden_p, vocab_p,
                                out_itemsize, buffered_weights)
    vmem_limit = int(min(budget, max(16 << 20, 2 * footprint)))
    vmem_limit = max(vmem_limit, min(budget, footprint))
    return block_m, vmem_limit


# --------------------------------------------------------------------------- #
# Forward
# --------------------------------------------------------------------------- #
@functools.partial(
    jax.jit,
    static_argnames=("vocab", "block_m", "out_dtype", "buffered_weights",
                     "vmem_limit"))
def _ffnn_call(inp, w1_p, b1_p, w2_p, b2_p, *, vocab, block_m, out_dtype,
               buffered_weights, vmem_limit):
    B = inp.shape[0]
    x = inp.reshape(B, -1)                       # == torch .view(B, -1)
    d_in = x.shape[1]
    d_in_p, hidden_p = w1_p.shape
    vocab_p = w2_p.shape[1]
    b_p = _round_up(B, block_m)

    # Only the activations are padded/cast per call (weights were hoisted).
    x_p = jnp.zeros((b_p, d_in_p), jnp.bfloat16).at[:B, :d_in].set(
        x.astype(jnp.bfloat16))

    grid = (b_p // block_m,)

    def _w_spec(shape):
        # Constant-index resident weights: single buffer when supported.
        if buffered_weights:
            return pl.BlockSpec(shape, lambda i: (0, 0),
                                pipeline_mode=pl.Buffered(1))
        return pl.BlockSpec(shape, lambda i: (0, 0))

    # TODO(synk): for production-sized vocab on v7x (64 MiB/TC), add a second
    # "arbitrary" grid axis streaming W2 in (hidden, 512-1024) column blocks
    # with an online log-softmax (running max / sum-of-exp in VMEM scratch),
    # so W2 never has to be fully VMEM-resident.

    out_itemsize = jnp.dtype(out_dtype).itemsize
    cost = pl.CostEstimate(
        flops=2 * b_p * (d_in_p * hidden_p + hidden_p * vocab_p),
        transcendentals=b_p * (hidden_p + vocab_p),  # erf + exp
        bytes_accessed=(x_p.size * 2 + w1_p.size * 2 + b1_p.size * 4
                        + w2_p.size * 2 + b2_p.size * 4
                        + b_p * vocab_p * out_itemsize),
    )

    out_padded = pl.pallas_call(
        _ffnn_kernel,
        out_shape=jax.ShapeDtypeStruct((b_p, vocab_p), out_dtype),
        grid=grid,
        in_specs=[
            pl.BlockSpec((block_m, d_in_p), lambda i: (i, 0)),   # x tile
            _w_spec((d_in_p, hidden_p)),                         # W1 resident
            _w_spec((1, hidden_p)),                              # b1 resident
            _w_spec((hidden_p, vocab_p)),                        # W2 resident
            _w_spec((1, vocab_p)),                               # b2 resident
        ],
        out_specs=pl.BlockSpec((block_m, vocab_p), lambda i: (i, 0)),
        compiler_params=pltpu.CompilerParams(
            dimension_semantics=("parallel",),
            vmem_limit_bytes=vmem_limit,
        ),
        cost_estimate=cost,
    )(x_p, w1_p, b1_p, w2_p, b2_p)

    return out_padded[:B, :vocab]


def ffnn_forward(inp, params, vocab, *, block_m=None, out_dtype=jnp.float32):
    """inp: (B, sent_len, embedding_dim); params from prepare_ffnn_params().

    Returns log-probabilities of shape (B, vocab), dtype out_dtype.
    """
    w1_p, b1_p, w2_p, b2_p = params
    d_in_p, hidden_p = w1_p.shape
    vocab_p = w2_p.shape[1]
    B = inp.shape[0]

    last_err = None
    # Prefer single-buffered resident weights (pl.Buffered(1)); fall back to the
    # default double-buffered specs if this build rejects pipeline_mode.
    for buffered in (True, False):
        bm, vmem_limit = _plan(B, d_in_p, hidden_p, vocab_p, out_dtype, buffered)
        if block_m is not None:
            bm = block_m
        try:
            return _ffnn_call(inp, w1_p, b1_p, w2_p, b2_p,
                              vocab=vocab, block_m=bm, out_dtype=out_dtype,
                              buffered_weights=buffered, vmem_limit=vmem_limit)
        except Exception as e:  # pragma: no cover - fallback path
            last_err = e
    raise last_err


# --------------------------------------------------------------------------- #
# Reference + self-test
# --------------------------------------------------------------------------- #
def _reference(inp, w1, b1, w2, b2):
    x = inp.reshape(inp.shape[0], -1)
    h = x @ w1 + b1.reshape(1, -1)
    h = jax.nn.gelu(h, approximate=False)
    logits = h @ w2 + b2.reshape(1, -1)
    return jax.nn.log_softmax(logits, axis=1)


if __name__ == "__main__":
    # Small shapes consistent with the module's forward (inp -> (B, sent_len, emb)).
    B = 8
    sent_len = 5
    embedding_dim = 16
    hidden_dim = 64
    vocab_size = 32
    d_in = embedding_dim * sent_len  # 80

    key = jax.random.PRNGKey(0)
    k_x, k_w1, k_b1, k_w2, k_b2 = jax.random.split(key, 5)

    inp = jax.random.normal(k_x, (B, sent_len, embedding_dim), dtype=jnp.float32)

    # Deterministic PyTorch-style (kaiming-uniform-ish) initialization.
    bound1 = 1.0 / math.sqrt(d_in)
    bound2 = 1.0 / math.sqrt(hidden_dim)
    w1 = jax.random.uniform(k_w1, (d_in, hidden_dim), jnp.float32, -bound1, bound1)
    b1 = jax.random.uniform(k_b1, (1, hidden_dim), jnp.float32, -bound1, bound1)
    w2 = jax.random.uniform(k_w2, (hidden_dim, vocab_size), jnp.float32, -bound2, bound2)
    b2 = jax.random.uniform(k_b2, (1, vocab_size), jnp.float32, -bound2, bound2)

    # Hoisted one-time weight padding / casting (perf feedback item 1).
    params, vocab = prepare_ffnn_params(w1, b1, w2, b2)

    out = ffnn_forward(inp, params, vocab)
    out = jax.block_until_ready(out)

    ref = _reference(inp, w1, b1, w2, b2)
    assert out.shape == (B, vocab_size), out.shape
    # bf16 MXU operands -> tolerance loosened deliberately vs. the f32 reference.
    assert jnp.allclose(out, ref, atol=2e-2, rtol=2e-2), "mismatch vs reference"
    # Rows must be valid log-probabilities (padded vocab lanes did not leak in).
    assert jnp.allclose(jax.scipy.special.logsumexp(out, axis=1),
                        jnp.zeros((B,)), atol=1e-3), "rows not normalized"

    print("KERNEL_OK")
</pallas_src>

<mosaic_0001>
module attributes {stable_mosaic.version = 11 : i64} {
  func.func @_ffnn_kernel(%arg0: i32, %arg1: memref<128x128xbf16, #tpu.memory_space<vmem>>, %arg2: memref<128x128xbf16, #tpu.memory_space<vmem>>, %arg3: memref<1x128xf32, #tpu.memory_space<vmem>>, %arg4: memref<128x128xbf16, #tpu.memory_space<vmem>>, %arg5: memref<1x128xf32, #tpu.memory_space<vmem>>, %arg6: memref<128x128xf32, #tpu.memory_space<vmem>>) attributes {dimension_semantics = [#tpu.dimension_semantics<parallel>], iteration_bounds = array<i64: 1>, scalar_prefetch = 0 : i64, scratch_operands = 0 : i64, tpu.core_type = #tpu.core_type<tc>, window_params = [{transform_indices = @transform_0, window_bounds = array<i64: 128, 128>}, {pipeline_mode = #tpu.pipeline_mode<synchronous>, transform_indices = @transform_1, window_bounds = array<i64: 128, 128>}, {pipeline_mode = #tpu.pipeline_mode<synchronous>, transform_indices = @transform_2, window_bounds = array<i64: 1, 128>}, {pipeline_mode = #tpu.pipeline_mode<synchronous>, transform_indices = @transform_3, window_bounds = array<i64: 128, 128>}, {pipeline_mode = #tpu.pipeline_mode<synchronous>, transform_indices = @transform_4, window_bounds = array<i64: 1, 128>}, {transform_indices = @transform_5, window_bounds = array<i64: 128, 128>}]} {
    %c0 = arith.constant 0 : index
    %c0_0 = arith.constant 0 : index
    %0 = vector.load %arg1[%c0, %c0_0] : memref<128x128xbf16, #tpu.memory_space<vmem>>, vector<128x128xbf16>
    %c0_1 = arith.constant 0 : index
    %c0_2 = arith.constant 0 : index
    %1 = vector.load %arg2[%c0_1, %c0_2] : memref<128x128xbf16, #tpu.memory_space<vmem>>, vector<128x128xbf16>
    %cst = arith.constant dense<0.000000e+00> : vector<128x128xf32>
    %2 = tpu.matmul %0, %1, %cst {dimension_numbers = #tpu.dot_dimension_numbers<[1], [0], [0], [1], [0, 0, 1, 1], [], []>} : vector<128x128xbf16>, vector<128x128xbf16>, vector<128x128xf32> -> vector<128x128xf32>
    %c0_3 = arith.constant 0 : index
    %c0_4 = arith.constant 0 : index
    %3 = vector.load %arg3[%c0_3, %c0_4] : memref<1x128xf32, #tpu.memory_space<vmem>>, vector<1x128xf32>
    %4 = vector.broadcast %3 : vector<1x128xf32> to vector<128x128xf32>
    %5 = arith.addf %2, %4 : vector<128x128xf32>
    %cst_5 = arith.constant 5.000000e-01 : f32
    %6 = vector.broadcast %cst_5 : f32 to vector<128x128xf32>
    %7 = arith.mulf %6, %5 : vector<128x128xf32>
    %cst_6 = arith.constant 0.707106769 : f32
    %8 = vector.broadcast %cst_6 : f32 to vector<128x128xf32>
    %9 = arith.mulf %5, %8 : vector<128x128xf32>
    %10 = math.erf %9 : vector<128x128xf32>
    %cst_7 = arith.constant 1.000000e+00 : f32
    %11 = vector.broadcast %cst_7 : f32 to vector<128x128xf32>
    %12 = arith.addf %11, %10 : vector<128x128xf32>
    %13 = arith.mulf %7, %12 : vector<128x128xf32>
    %14 = arith.truncf %13 : vector<128x128xf32> to vector<128x128xbf16>
    %c0_8 = arith.constant 0 : index
    %c0_9 = arith.constant 0 : index
    %15 = vector.load %arg4[%c0_8, %c0_9] : memref<128x128xbf16, #tpu.memory_space<vmem>>, vector<128x128xbf16>
    %cst_10 = arith.constant dense<0.000000e+00> : vector<128x128xf32>
    %16 = tpu.matmul %14, %15, %cst_10 {dimension_numbers = #tpu.dot_dimension_numbers<[1], [0], [0], [1], [0, 0, 1, 1], [], []>} : vector<128x128xbf16>, vector<128x128xbf16>, vector<128x128xf32> -> vector<128x128xf32>
    %c0_11 = arith.constant 0 : index
    %c0_12 = arith.constant 0 : index
    %17 = vector.load %arg5[%c0_11, %c0_12] : memref<1x128xf32, #tpu.memory_space<vmem>>, vector<1x128xf32>
    %18 = vector.broadcast %17 : vector<1x128xf32> to vector<128x128xf32>
    %19 = arith.addf %16, %18 : vector<128x128xf32>
    %cst_13 = arith.constant dense<0xFF800000> : vector<128xf32>
    %20 = vector.multi_reduction <maximumf>, %19, %cst_13 [1] : vector<128x128xf32> to vector<128xf32>
    %21 = vector.shape_cast %20 : vector<128xf32> to vector<128x1xf32>
    %22 = vector.broadcast %21 : vector<128x1xf32> to vector<128x128xf32>
    %23 = arith.subf %19, %22 : vector<128x128xf32>
    %24 = math.exp %23 : vector<128x128xf32>
    %cst_14 = arith.constant dense<0.000000e+00> : vector<128xf32>
    %25 = vector.multi_reduction <add>, %24, %cst_14 [1] : vector<128x128xf32> to vector<128xf32>
    %26 = vector.shape_cast %25 : vector<128xf32> to vector<128x1xf32>
    %27 = math.log %26 : vector<128x1xf32>
    %28 = vector.broadcast %27 : vector<128x1xf32> to vector<128x128xf32>
    %29 = arith.subf %23, %28 : vector<128x128xf32>
    %c0_15 = arith.constant 0 : index
    %c0_16 = arith.constant 0 : index
    %30 = vector.load %arg6[%c0_15, %c0_16] : memref<128x128xf32, #tpu.memory_space<vmem>>, vector<128x128xf32>
    tpu.vector_store %arg6[%c0_15, %c0_16], %29 {strides = array<i32>} : memref<128x128xf32, #tpu.memory_space<vmem>>, vector<128x128xf32>,
    return
  }
  func.func @transform_0(%arg0: i32) -> (i32, i32) {
    %c0_i32 = arith.constant 0 : i32
    %c0_i32_0 = arith.constant 0 : i32
    return %arg0, %c0_i32 : i32, i32
  }
  func.func @transform_1(%arg0: i32) -> (i32, i32) {
    %c0_i32 = arith.constant 0 : i32
    %c0_i32_0 = arith.constant 0 : i32
    %c0_i32_1 = arith.constant 0 : i32
    return %c0_i32, %c0_i32_0 : i32, i32
  }
  func.func @transform_2(%arg0: i32) -> (i32, i32) {
    %c0_i32 = arith.constant 0 : i32
    %c0_i32_0 = arith.constant 0 : i32
    %c0_i32_1 = arith.constant 0 : i32
    return %c0_i32, %c0_i32_0 : i32, i32
  }
  func.func @transform_3(%arg0: i32) -> (i32, i32) {
    %c0_i32 = arith.constant 0 : i32
    %c0_i32_0 = arith.constant 0 : i32
    %c0_i32_1 = arith.constant 0 : i32
    return %c0_i32, %c0_i32_0 : i32, i32
  }
  func.func @transform_4(%arg0: i32) -> (i32, i32) {
    %c0_i32 = arith.constant 0 : i32
    %c0_i32_0 = arith.constant 0 : i32
    %c0_i32_1 = arith.constant 0 : i32
    return %c0_i32, %c0_i32_0 : i32, i32
  }
  func.func @transform_5(%arg0: i32) -> (i32, i32) {
    %c0_i32 = arith.constant 0 : i32
    %c0_i32_0 = arith.constant 0 : i32
    return %arg0, %c0_i32 : i32, i32
  }
}

module attributes {stable_mosaic.version = 11 : i64} {
  func.func @_ffnn_kernel(%arg0: i32, %arg1: memref<128x128xbf16, #tpu.memory_space<vmem>>, %arg2: memref<128x128xbf16, #tpu.memory_space<vmem>>, %arg3: memref<1x128xf32, #tpu.memory_space<vmem>>, %arg4: memref<128x128xbf16, #tpu.memory_space<vmem>>, %arg5: memref<1x128xf32, #tpu.memory_space<vmem>>, %arg6: memref<128x128xf32, #tpu.memory_space<vmem>>) attributes {dimension_semantics = [#tpu.dimension_semantics<parallel>], iteration_bounds = array<i64: 1>, scalar_prefetch = 0 : i64, scratch_operands = 0 : i64, tpu.core_type = #tpu.core_type<tc>, window_params = [{transform_indices = @transform_0, window_bounds = array<i64: 128, 128>}, {pipeline_mode = #tpu.pipeline_mode<synchronous>, transform_indices = @transform_1, window_bounds = array<i64: 128, 128>}, {pipeline_mode = #tpu.pipeline_mode<synchronous>, transform_indices = @transform_2, window_bounds = array<i64: 1, 128>}, {pipeline_mode = #tpu.pipeline_mode<synchronous>, transform_indices = @transform_3, window_bounds = array<i64: 128, 128>}, {pipeline_mode = #tpu.pipeline_mode<synchronous>, transform_indices = @transform_4, window_bounds = array<i64: 1, 128>}, {transform_indices = @transform_5, window_bounds = array<i64: 128, 128>}]} {
    %c0 = arith.constant 0 : index
    %c0_0 = arith.constant 0 : index
    %0 = vector.load %arg1[%c0, %c0_0] : memref<128x128xbf16, #tpu.memory_space<vmem>>, vector<128x128xbf16>
    %c0_1 = arith.constant 0 : index
    %c0_2 = arith.constant 0 : index
    %1 = vector.load %arg2[%c0_1, %c0_2] : memref<128x128xbf16, #tpu.memory_space<vmem>>, vector<128x128xbf16>
    %cst = arith.constant dense<0.000000e+00> : vector<128x128xf32>
    %2 = tpu.matmul %0, %1, %cst {dimension_numbers = #tpu.dot_dimension_numbers<[1], [0], [0], [1], [0, 0, 1, 1], [], []>} : vector<128x128xbf16>, vector<128x128xbf16>, vector<128x128xf32> -> vector<128x128xf32>
    %c0_3 = arith.constant 0 : index
    %c0_4 = arith.constant 0 : index
    %3 = vector.load %arg3[%c0_3, %c0_4] : memref<1x128xf32, #tpu.memory_space<vmem>>, vector<1x128xf32>
    %4 = vector.broadcast %3 : vector<1x128xf32> to vector<128x128xf32>
    %5 = arith.addf %2, %4 : vector<128x128xf32>
    %cst_5 = arith.constant 5.000000e-01 : f32
    %6 = vector.broadcast %cst_5 : f32 to vector<128x128xf32>
    %7 = arith.mulf %6, %5 : vector<128x128xf32>
    %cst_6 = arith.constant 0.707106769 : f32
    %8 = vector.broadcast %cst_6 : f32 to vector<128x128xf32>
    %9 = arith.mulf %5, %8 : vector<128x128xf32>
    %10 = math.erf %9 : vector<128x128xf32>
    %cst_7 = arith.constant 1.000000e+00 : f32
    %11 = vector.broadcast %cst_7 : f32 to vector<128x128xf32>
    %12 = arith.addf %11, %10 : vector<128x128xf32>
    %13 = arith.mulf %7, %12 : vector<128x128xf32>
    %14 = arith.truncf %13 : vector<128x128xf32> to vector<128x128xbf16>
    %c0_8 = arith.constant 0 : index
    %c0_9 = arith.constant 0 : index
    %15 = vector.load %arg4[%c0_8, %c0_9] : memref<128x128xbf16, #tpu.memory_space<vmem>>, vector<128x128xbf16>
    %cst_10 = arith.constant dense<0.000000e+00> : vector<128x128xf32>
    %16 = tpu.matmul %14, %15, %cst_10 {dimension_numbers = #tpu.dot_dimension_numbers<[1], [0], [0], [1], [0, 0, 1, 1], [], []>} : vector<128x128xbf16>, vector<128x128xbf16>, vector<128x128xf32> -> vector<128x128xf32>
    %c0_11 = arith.constant 0 : index
    %c0_12 = arith.constant 0 : index
    %17 = vector.load %arg5[%c0_11, %c0_12] : memref<1x128xf32, #tpu.memory_space<vmem>>, vector<1x128xf32>
    %18 = vector.broadcast %17 : vector<1x128xf32> to vector<128x128xf32>
    %19 = arith.addf %16, %18 : vector<128x128xf32>
    %cst_13 = arith.constant dense<0xFF800000> : vector<128xf32>
    %20 = vector.multi_reduction <maximumf>, %19, %cst_13 [1] : vector<128x128xf32> to vector<128xf32>
    %21 = vector.shape_cast %20 : vector<128xf32> to vector<128x1xf32>
    %22 = vector.broadcast %21 : vector<128x1xf32> to vector<128x128xf32>
    %23 = arith.subf %19, %22 : vector<128x128xf32>
    %24 = math.exp %23 : vector<128x128xf32>
    %cst_14 = arith.constant dense<0.000000e+00> : vector<128xf32>
    %25 = vector.multi_reduction <add>, %24, %cst_14 [1] : vector<128x128xf32> to vector<128xf32>
    %26 = vector.shape_cast %25 : vector<128xf32> to vector<128x1xf32>
    %27 = math.log %26 : vector<128x1xf32>
    %28 = vector.broadcast %27 : vector<128x1xf32> to vector<128x128xf32>
    %29 = arith.subf %23, %28 : vector<128x128xf32>
    %c0_15 = arith.constant 0 : index
    %c0_16 = arith.constant 0 : index
    %30 = vector.load %arg6[%c0_15, %c0_16] : memref<128x128xf32, #tpu.memory_space<vmem>>, vector<128x128xf32>
    tpu.vector_store %arg6[%c0_15, %c0_16], %29 {strides = array<i32>} : memref<128x128xf32, #tpu.memory_space<vmem>>, vector<128x128xf32>,
    return
  }
  func.func @transform_0(%arg0: i32) -> (i32, i32) {
    %c0_i32 = arith.constant 0 : i32
    %c0_i32_0 = arith.constant 0 : i32
    return %arg0, %c0_i32 : i32, i32
  }
  func.func @transform_1(%arg0: i32) -> (i32, i32) {
    %c0_i32 = arith.constant 0 : i32
    %c0_i32_0 = arith.constant 0 : i32
    %c0_i32_1 = arith.constant 0 : i32
    return %c0_i32, %c0_i32_0 : i32, i32
  }
  func.func @transform_2(%arg0: i32) -> (i32, i32) {
    %c0_i32 = arith.constant 0 : i32
    %c0_i32_0 = arith.constant 0 : i32
    %c0_i32_1 = arith.constant 0 : i32
    return %c0_i32, %c0_i32_0 : i32, i32
  }
  func.func @transform_3(%arg0: i32) -> (i32, i32) {
    %c0_i32 = arith.constant 0 : i32
    %c0_i32_0 = arith.constant 0 : i32
    %c0_i32_1 = arith.constant 0 : i32
    return %c0_i32, %c0_i32_0 : i32, i32
  }
  func.func @transform_4(%arg0: i32) -> (i32, i32) {
    %c0_i32 = arith.constant 0 : i32
    %c0_i32_0 = arith.constant 0 : i32
    %c0_i32_1 = arith.constant 0 : i32
    return %c0_i32, %c0_i32_0 : i32, i32
  }
  func.func @transform_5(%arg0: i32) -> (i32, i32) {
    %c0_i32 = arith.constant 0 : i32
    %c0_i32_0 = arith.constant 0 : i32
    return %arg0, %c0_i32 : i32, i32
  }
}

</mosaic_0001>

<llo_original>
// kernel: _ffnn_call.1
$region0: #{_ffnn_call.1}
  #allocation0 [shape = 'u32[]', space=smem, size = 0x4, offset = 0x4, fixed_abs, tag = 'smem constant byte address 0x4 - core index']
  #allocation1 [shape = 'u32[144,128]{1,0:T(1,128)}', space=vmem, size = 0x12000, scoped, tag = 'internal scratch']
  %s0 = inlined_call_operand.vmem [shape: bf16[128,128], index: 0, kind: input, shape index: {}]
  %s1 = inlined_call_operand.vmem [shape: bf16[128,128], index: 1, kind: input, shape index: {}]
  %s2 = inlined_call_operand.vmem [shape: f32[1,128], index: 2, kind: input, shape index: {}]
  %s3 = inlined_call_operand.vmem [shape: bf16[128,128], index: 3, kind: input, shape index: {}]
  %s4 = inlined_call_operand.vmem [shape: f32[1,128], index: 4, kind: input, shape index: {}]
  %s5 = inlined_call_operand.vmem [shape: f32[128,128], index: 5, kind: output, shape index: {}]
  %s6 = sld [smem:[#allocation0]]
  $region30: #{_ffnn_call.1} parent=0
    _
  %s8 = ssub.s32 1, %s6
  %s9 = scalar_select 0, %s8, %s6
  // Predicated region
  $region2: #{_ffnn_call.1} parent=0 // pred_check
    _
  $region3: #{_ffnn_call.1} parent=0 // pred_check_branch
    %11 = sbr.rel (0) target = $region5
  $region4: #{_ffnn_call.1} parent=0 // pred_region
    _
  $region5: #{_ffnn_call.1} parent=0 // pred_fallthru
    _
  // Predicated region
  $region6: #{_ffnn_call.1} parent=0 // pred_check
    _
  $region7: #{_ffnn_call.1} parent=0 // pred_check_branch
    %13 = sbr.rel (0) target = $region9
  $region8: #{_ffnn_call.1} parent=0 // pred_region
    _
  $region9: #{_ffnn_call.1} parent=0 // pred_fallthru
    _
  // Predicated region
  $region10: #{_ffnn_call.1} parent=0 // pred_check
    _
  $region11: #{_ffnn_call.1} parent=0 // pred_check_branch
    %15 = sbr.rel (0) target = $region13
  $region12: #{_ffnn_call.1} parent=0 // pred_region
    _
  $region13: #{_ffnn_call.1} parent=0 // pred_fallthru
    _
  // Predicated region
  $region14: #{_ffnn_call.1} parent=0 // pred_check
    _
  $region15: #{_ffnn_call.1} parent=0 // pred_check_branch
    %17 = sbr.rel (0) target = $region17
  $region16: #{_ffnn_call.1} parent=0 // pred_region
    _
  $region17: #{_ffnn_call.1} parent=0 // pred_fallthru
    _
  // Predicated region
  $region18: #{_ffnn_call.1} parent=0 // pred_check
    _
  $region19: #{_ffnn_call.1} parent=0 // pred_check_branch
    %19 = sbr.rel (0) target = $region21
  $region20: #{_ffnn_call.1} parent=0 // pred_region
    _
  $region21: #{_ffnn_call.1} parent=0 // pred_fallthru
    _
  %v21 = vld [vmem:[%s0] sm:$0xf]
  %v22 = vld [vmem:[%s0 + $0x4] sm:$0xf]
  %v23 = vld [vmem:[%s0 + $0x8] sm:$0xf]
  %v24 = vld [vmem:[%s0 + $0xc] sm:$0xf]
  %v25 = vld [vmem:[%s0 + $0x10] sm:$0xf]
  %v26 = vld [vmem:[%s0 + $0x14] sm:$0xf]
  %v27 = vld [vmem:[%s0 + $0x18] sm:$0xf]
  %v28 = vld [vmem:[%s0 + $0x1c] sm:$0xf]
  %v29 = vld [vmem:[%s0 + $0x20] sm:$0xf]
  %v30 = vld [vmem:[%s0 + $0x24] sm:$0xf]
  %v31 = vld [vmem:[%s0 + $0x28] sm:$0xf]
  %v32 = vld [vmem:[%s0 + $0x2c] sm:$0xf]
  %v33 = vld [vmem:[%s0 + $0x30] sm:$0xf]
  %v34 = vld [vmem:[%s0 + $0x34] sm:$0xf]
  %v35 = vld [vmem:[%s0 + $0x38] sm:$0xf]
  %v36 = vld [vmem:[%s0 + $0x3c] sm:$0xf]
  %v37 = vld [vmem:[%s1] sm:$0xf]
  %v38 = vld [vmem:[%s1 + $0x4] sm:$0xf]
  %v39 = vld [vmem:[%s1 + $0x8] sm:$0xf]
  %v40 = vld [vmem:[%s1 + $0xc] sm:$0xf]
  %v41 = vld [vmem:[%s1 + $0x10] sm:$0xf]
  %v42 = vld [vmem:[%s1 + $0x14] sm:$0xf]
  %v43 = vld [vmem:[%s1 + $0x18] sm:$0xf]
  %v44 = vld [vmem:[%s1 + $0x1c] sm:$0xf]
  %v45 = vld [vmem:[%s1 + $0x20] sm:$0xf]
  %v46 = vld [vmem:[%s1 + $0x24] sm:$0xf]
  %v47 = vld [vmem:[%s1 + $0x28] sm:$0xf]
  %v48 = vld [vmem:[%s1 + $0x2c] sm:$0xf]
  %v49 = vld [vmem:[%s1 + $0x30] sm:$0xf]
  %v50 = vld [vmem:[%s1 + $0x34] sm:$0xf]
  %v51 = vld [vmem:[%s1 + $0x38] sm:$0xf]
  %v52 = vld [vmem:[%s1 + $0x3c] sm:$0xf]
  %v53 = vld [vmem:[%s2] sm:$0x1]
  %v55 = vlaneseq
  %v56 = vshrl.u32 %v55, 7
  %v57 = vsub.s32 0, %v56
  %v58 = vrot.slane %v53, %v57
  %v76 = vunpack.c.l.b16 %v21
  %v77 = vunpack.c.l.b16 %v22
  %v78 = vunpack.c.l.b16 %v23
  %v79 = vunpack.c.l.b16 %v24
  %v80 = vunpack.c.l.b16 %v25
  %v81 = vunpack.c.l.b16 %v26
  %v82 = vunpack.c.l.b16 %v27
  %v83 = vunpack.c.l.b16 %v28
  %v84 = vunpack.c.l.b16 %v29
  %v85 = vunpack.c.l.b16 %v30
  %v86 = vunpack.c.l.b16 %v31
  %v87 = vunpack.c.l.b16 %v32
  %v88 = vunpack.c.l.b16 %v33
  %v89 = vunpack.c.l.b16 %v34
  %v90 = vunpack.c.l.b16 %v35
  %v91 = vunpack.c.l.b16 %v36
  %v92 = vpack.c.b16 %v77, %v76
  %v93 = vpack.c.b16 %v79, %v78
  %v94 = vpack.c.b16 %v81, %v80
  %v95 = vpack.c.b16 %v83, %v82
  %v96 = vpack.c.b16 %v85, %v84
  %v97 = vpack.c.b16 %v87, %v86
  %v98 = vpack.c.b16 %v89, %v88
  %v99 = vpack.c.b16 %v91, %v90
  %v124 = vunpack.c.l.b16 %v37
  %v125 = vunpack.c.l.b16 %v38
  %v126 = vunpack.c.l.b16 %v39
  %v127 = vunpack.c.l.b16 %v40
  %v128 = vunpack.c.l.b16 %v41
  %v129 = vunpack.c.l.b16 %v42
  %v130 = vunpack.c.l.b16 %v43
  %v131 = vunpack.c.l.b16 %v44
  %v132 = vunpack.c.l.b16 %v45
  %v133 = vunpack.c.l.b16 %v46
  %v134 = vunpack.c.l.b16 %v47
  %v135 = vunpack.c.l.b16 %v48
  %v136 = vunpack.c.l.b16 %v49
  %v137 = vunpack.c.l.b16 %v50
  %v138 = vunpack.c.l.b16 %v51
  %v139 = vunpack.c.l.b16 %v52
  %v140 = vpack.c.b16 %v125, %v124
  %v141 = vpack.c.b16 %v127, %v126
  %v142 = vpack.c.b16 %v129, %v128
  %v143 = vpack.c.b16 %v131, %v130
  %v144 = vpack.c.b16 %v133, %v132
  %v145 = vpack.c.b16 %v135, %v134
  %v146 = vpack.c.b16 %v137, %v136
  %v147 = vpack.c.b16 %v139, %v138
  %156 = vmatprep.subr.bf16.mxu0 0
  %157 = vmatpush1.bf16.msra.mxu0 %v140
  %158 = vmatprep.subr.bf16.mxu0 0
  %159 = vmatpush1.bf16.msra.mxu0 %v141
  %160 = vmatprep.subr.bf16.mxu0 0
  %161 = vmatpush1.bf16.msra.mxu0 %v142
  %162 = vmatprep.subr.bf16.mxu0 0
  %163 = vmatpush1.bf16.msra.mxu0 %v143
  %164 = vmatprep.subr.bf16.mxu0 0
  %165 = vmatpush1.bf16.msra.mxu0 %v144
  %166 = vmatprep.subr.bf16.mxu0 0
  %167 = vmatpush1.bf16.msra.mxu0 %v145
  %168 = vmatprep.subr.bf16.mxu0 0
  %169 = vmatpush1.bf16.msra.mxu0 %v146
  %170 = vmatprep.subr.bf16.mxu0 0
  %171 = vmatpush1.bf16.msra.mxu0 %v147
  %172 = vmatprep.subr.bf16.mxu0 0
  %173 = vmatpush1.bf16.msra.mxu0 0
  %174 = vmatprep.subr.bf16.mxu0 0
  %175 = vmatpush1.bf16.msra.mxu0 0
  %176 = vmatprep.subr.bf16.mxu0 0
  %177 = vmatpush1.bf16.msra.mxu0 0
  %178 = vmatprep.subr.bf16.mxu0 0
  %179 = vmatpush1.bf16.msra.mxu0 0
  %180 = vmatprep.subr.bf16.mxu0 0
  %181 = vmatpush1.bf16.msra.mxu0 0
  %182 = vmatprep.subr.bf16.mxu0 0
  %183 = vmatpush1.bf16.msra.mxu0 0
  %184 = vmatprep.subr.bf16.mxu0 0
  %185 = vmatpush1.bf16.msra.mxu0 0
  %186 = vmatprep.subr.bf16.mxu0 0
  %187 = vmatpush1.bf16.msra.mxu0 0
  %188 = vmatprep.mubr.bf16.mxu0 0
  %189 = vmatmul.mubr.bf16.gmra.mrb[0].mxu0 %v92
  %v190 = vpop.f32.mrb[0].mxu0
  %v191 = vadd.f32 %v58, %v190
  %v192 = vpop.f32.mrb[0].mxu0
  %v193 = vpop.f32.mrb[0].mxu0
  %v194 = vadd.f32 %v58, %v193
  %v195 = vpop.f32.mrb[0].mxu0
  %196 = vmatprep.mubr.bf16.mxu0 0
  %197 = vmatmul.mubr.bf16.gmra.mrb[0].mxu0 %v93
  %v198 = vpop.f32.mrb[0].mxu0
  %v199 = vadd.f32 %v58, %v198
  %v200 = vpop.f32.mrb[0].mxu0
  %v201 = vpop.f32.mrb[0].mxu0
  %v202 = vadd.f32 %v58, %v201
  %v203 = vpop.f32.mrb[0].mxu0
  %204 = vmatprep.mubr.bf16.mxu0 0
  %205 = vmatmul.mubr.bf16.gmra.mrb[0].mxu0 %v94
  %v206 = vpop.f32.mrb[0].mxu0
  %v207 = vadd.f32 %v58, %v206
  %v208 = vpop.f32.mrb[0].mxu0
  %v209 = vpop.f32.mrb[0].mxu0
  %v210 = vadd.f32 %v58, %v209
  %v211 = vpop.f32.mrb[0].mxu0
  %212 = vmatprep.mubr.bf16.mxu0 0
  %213 = vmatmul.mubr.bf16.gmra.mrb[0].mxu0 %v95
  %v214 = vpop.f32.mrb[0].mxu0
  %v215 = vadd.f32 %v58, %v214
  %v216 = vpop.f32.mrb[0].mxu0
  %v217 = vpop.f32.mrb[0].mxu0
  %v218 = vadd.f32 %v58, %v217
  %v219 = vpop.f32.mrb[0].mxu0
  %220 = vmatprep.mubr.bf16.mxu0 0
  %221 = vmatmul.mubr.bf16.gmra.mrb[0].mxu0 %v96
  %v222 = vpop.f32.mrb[0].mxu0
  %v223 = vadd.f32 %v58, %v222
  %v224 = vpop.f32.mrb[0].mxu0
  %v225 = vpop.f32.mrb[0].mxu0
  %v226 = vadd.f32 %v58, %v225
  %v227 = vpop.f32.mrb[0].mxu0
  %228 = vmatprep.mubr.bf16.mxu0 0
  %229 = vmatmul.mubr.bf16.gmra.mrb[0].mxu0 %v97
  %v230 = vpop.f32.mrb[0].mxu0
  %v231 = vadd.f32 %v58, %v230
  %v232 = vpop.f32.mrb[0].mxu0
  %v233 = vpop.f32.mrb[0].mxu0
  %v234 = vadd.f32 %v58, %v233
  %v235 = vpop.f32.mrb[0].mxu0
  %236 = vmatprep.mubr.bf16.mxu0 0
  %237 = vmatmul.mubr.bf16.gmra.mrb[0].mxu0 %v98
  %v238 = vpop.f32.mrb[0].mxu0
  %v239 = vadd.f32 %v58, %v238
  %v240 = vpop.f32.mrb[0].mxu0
  %v241 = vpop.f32.mrb[0].mxu0
  %v242 = vadd.f32 %v58, %v241
  %v243 = vpop.f32.mrb[0].mxu0
  %244 = vmatprep.mubr.bf16.mxu0 0
  %245 = vmatmul.mubr.bf16.gmra.mrb[0].mxu0 %v99
  %v246 = vpop.f32.mrb[0].mxu0
  %v247 = vadd.f32 %v58, %v246
  %v248 = vpop.f32.mrb[0].mxu0
  %v249 = vpop.f32.mrb[0].mxu0
  %v250 = vadd.f32 %v58, %v249
  %v251 = vpop.f32.mrb[0].mxu0
  %252 = vdwg.mxu0
  %v253 = vmul.f32 %v191, 0.5
  %v254 = vmul.f32 %v194, 0.5
  %v255 = vmul.f32 %v199, 0.5
  %v256 = vmul.f32 %v202, 0.5
  %v257 = vmul.f32 %v207, 0.5
  %v258 = vmul.f32 %v210, 0.5
  %v259 = vmul.f32 %v215, 0.5
  %v260 = vmul.f32 %v218, 0.5
  %v261 = vmul.f32 %v223, 0.5
  %v262 = vmul.f32 %v226, 0.5
  %v263 = vmul.f32 %v231, 0.5
  %v264 = vmul.f32 %v234, 0.5
  %v265 = vmul.f32 %v239, 0.5
  %v266 = vmul.f32 %v242, 0.5
  %v267 = vmul.f32 %v247, 0.5
  %v268 = vmul.f32 %v250, 0.5
  %v269 = vmul.f32 %v191, 0.70710677
  %v270 = vmul.f32 %v194, 0.70710677
  %v271 = vmul.f32 %v199, 0.70710677
  %v272 = vmul.f32 %v202, 0.70710677
  %v273 = vmul.f32 %v207, 0.70710677
  %v274 = vmul.f32 %v210, 0.70710677
  %v275 = vmul.f32 %v215, 0.70710677
  %v276 = vmul.f32 %v218, 0.70710677
  %v277 = vmul.f32 %v223, 0.70710677
  %v278 = vmul.f32 %v226, 0.70710677
  %v279 = vmul.f32 %v231, 0.70710677
  %v280 = vmul.f32 %v234, 0.70710677
  %v281 = vmul.f32 %v239, 0.70710677
  %v282 = vmul.f32 %v242, 0.70710677
  %v283 = vmul.f32 %v247, 0.70710677
  %v284 = vmul.f32 %v250, 0.70710677
  %v285 = verf.f32.pop %v269
  %v286 = verf.f32.pop %v270
  %v287 = verf.f32.pop %v271
  %v288 = verf.f32.pop %v272
  %v289 = verf.f32.pop %v273
  %v290 = verf.f32.pop %v274
  %v291 = verf.f32.pop %v275
  %v292 = verf.f32.pop %v276
  %v293 = verf.f32.pop %v277
  %v294 = verf.f32.pop %v278
  %v295 = verf.f32.pop %v279
  %v296 = verf.f32.pop %v280
  %v297 = verf.f32.pop %v281
  %v298 = verf.f32.pop %v282
  %v299 = verf.f32.pop %v283
  %v300 = verf.f32.pop %v284
  %v301 = vadd.f32 %v285, 1.0
  %v302 = vadd.f32 %v286, 1.0
  %v303 = vadd.f32 %v287, 1.0
  %v304 = vadd.f32 %v288, 1.0
  %v305 = vadd.f32 %v289, 1.0
  %v306 = vadd.f32 %v290, 1.0
  %v307 = vadd.f32 %v291, 1.0
  %v308 = vadd.f32 %v292, 1.0
  %v309 = vadd.f32 %v293, 1.0
  %v310 = vadd.f32 %v294, 1.0
  %v311 = vadd.f32 %v295, 1.0
  %v312 = vadd.f32 %v296, 1.0
  %v313 = vadd.f32 %v297, 1.0
  %v314 = vadd.f32 %v298, 1.0
  %v315 = vadd.f32 %v299, 1.0
  %v316 = vadd.f32 %v300, 1.0
  %v317 = vmul.f32 %v253, %v301
  %v318 = vmul.f32 %v254, %v302
  %v319 = vmul.f32 %v255, %v303
  %v320 = vmul.f32 %v256, %v304
  %v321 = vmul.f32 %v257, %v305
  %v322 = vmul.f32 %v258, %v306
  %v323 = vmul.f32 %v259, %v307
  %v324 = vmul.f32 %v260, %v308
  %v325 = vmul.f32 %v261, %v309
  %v326 = vmul.f32 %v262, %v310
  %v327 = vmul.f32 %v263, %v311
  %v328 = vmul.f32 %v264, %v312
  %v329 = vmul.f32 %v265, %v313
  %v330 = vmul.f32 %v266, %v314
  %v331 = vmul.f32 %v267, %v315
  %v332 = vmul.f32 %v268, %v316
  %v333 = vpack.c.bf16 %v318, %v317
  %v334 = vpack.c.bf16 %v320, %v319
  %v335 = vpack.c.bf16 %v322, %v321
  %v336 = vpack.c.bf16 %v324, %v323
  %v337 = vpack.c.bf16 %v326, %v325
  %v338 = vpack.c.bf16 %v328, %v327
  %v339 = vpack.c.bf16 %v330, %v329
  %v340 = vpack.c.bf16 %v332, %v331
  %v341 = vld [vmem:[%s3] sm:$0xf]
  %v342 = vld [vmem:[%s3 + $0x4] sm:$0xf]
  %v343 = vld [vmem:[%s3 + $0x8] sm:$0xf]
  %v344 = vld [vmem:[%s3 + $0xc] sm:$0xf]
  %v345 = vld [vmem:[%s3 + $0x10] sm:$0xf]
  %v346 = vld [vmem:[%s3 + $0x14] sm:$0xf]
  %v347 = vld [vmem:[%s3 + $0x18] sm:$0xf]
  %v348 = vld [vmem:[%s3 + $0x1c] sm:$0xf]
  %v349 = vld [vmem:[%s3 + $0x20] sm:$0xf]
  %v350 = vld [vmem:[%s3 + $0x24] sm:$0xf]
  %v351 = vld [vmem:[%s3 + $0x28] sm:$0xf]
  %v352 = vld [vmem:[%s3 + $0x2c] sm:$0xf]
  %v353 = vld [vmem:[%s3 + $0x30] sm:$0xf]
  %v354 = vld [vmem:[%s3 + $0x34] sm:$0xf]
  %v355 = vld [vmem:[%s3 + $0x38] sm:$0xf]
  %v356 = vld [vmem:[%s3 + $0x3c] sm:$0xf]
  %v357 = vld [vmem:[%s4] sm:$0x1]
  %v359 = vlaneseq
  %v360 = vshrl.u32 %v359, 7
  %v361 = vsub.s32 0, %v360
  %v362 = vrot.slane %v357, %v361
  %v380 = vunpack.c.l.b16 %v341
  %v381 = vunpack.c.l.b16 %v342
  %v382 = vunpack.c.l.b16 %v343
  %v383 = vunpack.c.l.b16 %v344
  %v384 = vunpack.c.l.b16 %v345
  %v385 = vunpack.c.l.b16 %v346
  %v386 = vunpack.c.l.b16 %v347
  %v387 = vunpack.c.l.b16 %v348
  %v388 = vunpack.c.l.b16 %v349
  %v389 = vunpack.c.l.b16 %v350
  %v390 = vunpack.c.l.b16 %v351
  %v391 = vunpack.c.l.b16 %v352
  %v392 = vunpack.c.l.b16 %v353
  %v393 = vunpack.c.l.b16 %v354
  %v394 = vunpack.c.l.b16 %v355
  %v395 = vunpack.c.l.b16 %v356
  %v396 = vpack.c.b16 %v381, %v380
  %v397 = vpack.c.b16 %v383, %v382
  %v398 = vpack.c.b16 %v385, %v384
  %v399 = vpack.c.b16 %v387, %v386
  %v400 = vpack.c.b16 %v389, %v388
  %v401 = vpack.c.b16 %v391, %v390
  %v402 = vpack.c.b16 %v393, %v392
  %v403 = vpack.c.b16 %v395, %v394
  %412 = vmatprep.subr.bf16.mxu0 0
  %413 = vmatpush1.bf16.msra.mxu0 %v396
  %414 = vmatprep.subr.bf16.mxu0 0
  %415 = vmatpush1.bf16.msra.mxu0 %v397
  %416 = vmatprep.subr.bf16.mxu0 0
  %417 = vmatpush1.bf16.msra.mxu0 %v398
  %418 = vmatprep.subr.bf16.mxu0 0
  %419 = vmatpush1.bf16.msra.mxu0 %v399
  %420 = vmatprep.subr.bf16.mxu0 0
  %421 = vmatpush1.bf16.msra.mxu0 %v400
  %422 = vmatprep.subr.bf16.mxu0 0
  %423 = vmatpush1.bf16.msra.mxu0 %v401
  %424 = vmatprep.subr.bf16.mxu0 0
  %425 = vmatpush1.bf16.msra.mxu0 %v402
  %426 = vmatprep.subr.bf16.mxu0 0
  %427 = vmatpush1.bf16.msra.mxu0 %v403
  %428 = vmatprep.subr.bf16.mxu0 0
  %429 = vmatpush1.bf16.msra.mxu0 0
  %430 = vmatprep.subr.bf16.mxu0 0
  %431 = vmatpush1.bf16.msra.mxu0 0
  %432 = vmatprep.subr.bf16.mxu0 0
  %433 = vmatpush1.bf16.msra.mxu0 0
  %434 = vmatprep.subr.bf16.mxu0 0
  %435 = vmatpush1.bf16.msra.mxu0 0
  %436 = vmatprep.subr.bf16.mxu0 0
  %437 = vmatpush1.bf16.msra.mxu0 0
  %438 = vmatprep.subr.bf16.mxu0 0
  %439 = vmatpush1.bf16.msra.mxu0 0
  %440 = vmatprep.subr.bf16.mxu0 0
  %441 = vmatpush1.bf16.msra.mxu0 0
  %442 = vmatprep.subr.bf16.mxu0 0
  %443 = vmatpush1.bf16.msra.mxu0 0
  %444 = vmatprep.mubr.bf16.mxu0 0
  %445 = vmatmul.mubr.bf16.gmra.mrb[0].mxu0 %v333
  %v446 = vpop.f32.mrb[0].mxu0
  %v447 = vadd.f32 %v362, %v446
  %v448 = vpop.f32.mrb[0].mxu0
  %v449 = vpop.f32.mrb[0].mxu0
  %v450 = vadd.f32 %v362, %v449
  %v451 = vpop.f32.mrb[0].mxu0
  %452 = vmatprep.mubr.bf16.mxu0 0
  %453 = vmatmul.mubr.bf16.gmra.mrb[0].mxu0 %v334
  %v454 = vpop.f32.mrb[0].mxu0
  %v455 = vadd.f32 %v362, %v454
  %v456 = vpop.f32.mrb[0].mxu0
  %v457 = vpop.f32.mrb[0].mxu0
  %v458 = vadd.f32 %v362, %v457
  %v459 = vpop.f32.mrb[0].mxu0
  %460 = vmatprep.mubr.bf16.mxu0 0
  %461 = vmatmul.mubr.bf16.gmra.mrb[0].mxu0 %v335
  %v462 = vpop.f32.mrb[0].mxu0
  %v463 = vadd.f32 %v362, %v462
  %v464 = vpop.f32.mrb[0].mxu0
  %v465 = vpop.f32.mrb[0].mxu0
  %v466 = vadd.f32 %v362, %v465
  %v467 = vpop.f32.mrb[0].mxu0
  %468 = vmatprep.mubr.bf16.mxu0 0
  %469 = vmatmul.mubr.bf16.gmra.mrb[0].mxu0 %v336
  %v470 = vpop.f32.mrb[0].mxu0
  %v471 = vadd.f32 %v362, %v470
  %v472 = vpop.f32.mrb[0].mxu0
  %v473 = vpop.f32.mrb[0].mxu0
  %v474 = vadd.f32 %v362, %v473
  %v475 = vpop.f32.mrb[0].mxu0
  %476 = vmatprep.mubr.bf16.mxu0 0
  %477 = vmatmul.mubr.bf16.gmra.mrb[0].mxu0 %v337
  %v478 = vpop.f32.mrb[0].mxu0
  %v479 = vadd.f32 %v362, %v478
  %v480 = vpop.f32.mrb[0].mxu0
  %v481 = vpop.f32.mrb[0].mxu0
  %v482 = vadd.f32 %v362, %v481
  %v483 = vpop.f32.mrb[0].mxu0
  %484 = vmatprep.mubr.bf16.mxu0 0
  %485 = vmatmul.mubr.bf16.gmra.mrb[0].mxu0 %v338
  %v486 = vpop.f32.mrb[0].mxu0
  %v487 = vadd.f32 %v362, %v486
  %v488 = vpop.f32.mrb[0].mxu0
  %v489 = vpop.f32.mrb[0].mxu0
  %v490 = vadd.f32 %v362, %v489
  %v491 = vpop.f32.mrb[0].mxu0
  %492 = vmatprep.mubr.bf16.mxu0 0
  %493 = vmatmul.mubr.bf16.gmra.mrb[0].mxu0 %v339
  %v494 = vpop.f32.mrb[0].mxu0
  %v495 = vadd.f32 %v362, %v494
  %v496 = vpop.f32.mrb[0].mxu0
  %v497 = vpop.f32.mrb[0].mxu0
  %v498 = vadd.f32 %v362, %v497
  %v499 = vpop.f32.mrb[0].mxu0
  %500 = vmatprep.mubr.bf16.mxu0 0
  %501 = vmatmul.mubr.bf16.gmra.mrb[0].mxu0 %v340
  %v502 = vpop.f32.mrb[0].mxu0
  %v503 = vadd.f32 %v362, %v502
  %v504 = vpop.f32.mrb[0].mxu0
  %v505 = vpop.f32.mrb[0].mxu0
  %v506 = vadd.f32 %v362, %v505
  %v507 = vpop.f32.mrb[0].mxu0
  %508 = vdwg.mxu0
  %509 = vmax.xlane.f32.xlu0 %v447
  %v510 = vpop.xlane.xlu0 %509
  %511 = vmax.xlane.f32.xlu0 %v450
  %v512 = vpop.xlane.xlu0 %511
  %513 = vmax.xlane.f32.xlu0 %v455
  %v514 = vpop.xlane.xlu0 %513
  %515 = vmax.xlane.f32.xlu0 %v458
  %v516 = vpop.xlane.xlu0 %515
  %517 = vmax.xlane.f32.xlu0 %v463
  %v518 = vpop.xlane.xlu0 %517
  %519 = vmax.xlane.f32.xlu0 %v466
  %v520 = vpop.xlane.xlu0 %519
  %521 = vmax.xlane.f32.xlu0 %v471
  %v522 = vpop.xlane.xlu0 %521
  %523 = vmax.xlane.f32.xlu0 %v474
  %v524 = vpop.xlane.xlu0 %523
  %525 = vmax.xlane.f32.xlu0 %v479
  %v526 = vpop.xlane.xlu0 %525
  %527 = vmax.xlane.f32.xlu0 %v482
  %v528 = vpop.xlane.xlu0 %527
  %529 = vmax.xlane.f32.xlu0 %v487
  %v530 = vpop.xlane.xlu0 %529
  %531 = vmax.xlane.f32.xlu0 %v490
  %v532 = vpop.xlane.xlu0 %531
  %533 = vmax.xlane.f32.xlu0 %v495
  %v534 = vpop.xlane.xlu0 %533
  %535 = vmax.xlane.f32.xlu0 %v498
  %v536 = vpop.xlane.xlu0 %535
  %537 = vmax.xlane.f32.xlu0 %v503
  %v538 = vpop.xlane.xlu0 %537
  %539 = vmax.xlane.f32.xlu0 %v506
  %v540 = vpop.xlane.xlu0 %539
  %v541 = vsub.f32 %v447, %v510
  %v542 = vsub.f32 %v450, %v512
  %v543 = vsub.f32 %v455, %v514
  %v544 = vsub.f32 %v458, %v516
  %v545 = vsub.f32 %v463, %v518
  %v546 = vsub.f32 %v466, %v520
  %v547 = vsub.f32 %v471, %v522
  %v548 = vsub.f32 %v474, %v524
  %v549 = vsub.f32 %v479, %v526
  %v550 = vsub.f32 %v482, %v528
  %v551 = vsub.f32 %v487, %v530
  %v552 = vsub.f32 %v490, %v532
  %v553 = vsub.f32 %v495, %v534
  %v554 = vsub.f32 %v498, %v536
  %v555 = vsub.f32 %v503, %v538
  %v556 = vsub.f32 %v506, %v540
  %v557 = vmul.f32 %v541, 1.442695
  %v558 = vpow.pop %v557
  %v559 = vmul.f32 %v542, 1.442695
  %v560 = vpow.pop %v559
  %v561 = vmul.f32 %v543, 1.442695
  %v562 = vpow.pop %v561
  %v563 = vmul.f32 %v544, 1.442695
  %v564 = vpow.pop %v563
  %v565 = vmul.f32 %v545, 1.442695
  %v566 = vpow.pop %v565
  %v567 = vmul.f32 %v546, 1.442695
  %v568 = vpow.pop %v567
  %v569 = vmul.f32 %v547, 1.442695
  %v570 = vpow.pop %v569
  %v571 = vmul.f32 %v548, 1.442695
  %v572 = vpow.pop %v571
  %v573 = vmul.f32 %v549, 1.442695
  %v574 = vpow.pop %v573
  %v575 = vmul.f32 %v550, 1.442695
  %v576 = vpow.pop %v575
  %v577 = vmul.f32 %v551, 1.442695
  %v578 = vpow.pop %v577
  %v579 = vmul.f32 %v552, 1.442695
  %v580 = vpow.pop %v579
  %v581 = vmul.f32 %v553, 1.442695
  %v582 = vpow.pop %v581
  %v583 = vmul.f32 %v554, 1.442695
  %v584 = vpow.pop %v583
  %v585 = vmul.f32 %v555, 1.442695
  %v586 = vpow.pop %v585
  %v587 = vmul.f32 %v556, 1.442695
  %v588 = vpow.pop %v587
  %589 = vadd.xlane.f32.xlu0 %v558
  %v590 = vpop.xlane.xlu0 %589
  %591 = vadd.xlane.f32.xlu0 %v560
  %v592 = vpop.xlane.xlu0 %591
  %593 = vadd.xlane.f32.xlu0 %v562
  %v594 = vpop.xlane.xlu0 %593
  %595 = vadd.xlane.f32.xlu0 %v564
  %v596 = vpop.xlane.xlu0 %595
  %597 = vadd.xlane.f32.xlu0 %v566
  %v598 = vpop.xlane.xlu0 %597
  %599 = vadd.xlane.f32.xlu0 %v568
  %v600 = vpop.xlane.xlu0 %599
  %601 = vadd.xlane.f32.xlu0 %v570
  %v602 = vpop.xlane.xlu0 %601
  %603 = vadd.xlane.f32.xlu0 %v572
  %v604 = vpop.xlane.xlu0 %603
  %605 = vadd.xlane.f32.xlu0 %v574
  %v606 = vpop.xlane.xlu0 %605
  %607 = vadd.xlane.f32.xlu0 %v576
  %v608 = vpop.xlane.xlu0 %607
  %609 = vadd.xlane.f32.xlu0 %v578
  %v610 = vpop.xlane.xlu0 %609
  %611 = vadd.xlane.f32.xlu0 %v580
  %v612 = vpop.xlane.xlu0 %611
  %613 = vadd.xlane.f32.xlu0 %v582
  %v614 = vpop.xlane.xlu0 %613
  %615 = vadd.xlane.f32.xlu0 %v584
  %v616 = vpop.xlane.xlu0 %615
  %617 = vadd.xlane.f32.xlu0 %v586
  %v618 = vpop.xlane.xlu0 %617
  %619 = vadd.xlane.f32.xlu0 %v588
  %v620 = vpop.xlane.xlu0 %619
  %v621 = vlog2.pop %v590
  %v622 = vmul.f32 %v621, 0.6931472
  %v623 = vlog2.pop %v592
  %v624 = vmul.f32 %v623, 0.6931472
  %v625 = vlog2.pop %v594
  %v626 = vmul.f32 %v625, 0.6931472
  %v627 = vlog2.pop %v596
  %v628 = vmul.f32 %v627, 0.6931472
  %v629 = vlog2.pop %v598
  %v630 = vmul.f32 %v629, 0.6931472
  %v631 = vlog2.pop %v600
  %v632 = vmul.f32 %v631, 0.6931472
  %v633 = vlog2.pop %v602
  %v634 = vmul.f32 %v633, 0.6931472
  %v635 = vlog2.pop %v604
  %v636 = vmul.f32 %v635, 0.6931472
  %v637 = vlog2.pop %v606
  %v638 = vmul.f32 %v637, 0.6931472
  %v639 = vlog2.pop %v608
  %v640 = vmul.f32 %v639, 0.6931472
  %v641 = vlog2.pop %v610
  %v642 = vmul.f32 %v641, 0.6931472
  %v643 = vlog2.pop %v612
  %v644 = vmul.f32 %v643, 0.6931472
  %v645 = vlog2.pop %v614
  %v646 = vmul.f32 %v645, 0.6931472
  %v647 = vlog2.pop %v616
  %v648 = vmul.f32 %v647, 0.6931472
  %v649 = vlog2.pop %v618
  %v650 = vmul.f32 %v649, 0.6931472
  %v651 = vlog2.pop %v620
  %v652 = vmul.f32 %v651, 0.6931472
  %v653 = vsub.f32 %v541, %v622
  %v654 = vsub.f32 %v542, %v624
  %v655 = vsub.f32 %v543, %v626
  %v656 = vsub.f32 %v544, %v628
  %v657 = vsub.f32 %v545, %v630
  %v658 = vsub.f32 %v546, %v632
  %v659 = vsub.f32 %v547, %v634
  %v660 = vsub.f32 %v548, %v636
  %v661 = vsub.f32 %v549, %v638
  %v662 = vsub.f32 %v550, %v640
  %v663 = vsub.f32 %v551, %v642
  %v664 = vsub.f32 %v552, %v644
  %v665 = vsub.f32 %v553, %v646
  %v666 = vsub.f32 %v554, %v648
  %v667 = vsub.f32 %v555, %v650
  %v668 = vsub.f32 %v556, %v652
  %669 = vst [vmem:[%s5] sm:$0xff] %v653
  %670 = vst [vmem:[%s5 + $0x8] sm:$0xff] %v654
  %671 = vst [vmem:[%s5 + $0x10] sm:$0xff] %v655
  %672 = vst [vmem:[%s5 + $0x18] sm:$0xff] %v656
  %673 = vst [vmem:[%s5 + $0x20] sm:$0xff] %v657
  %674 = vst [vmem:[%s5 + $0x28] sm:$0xff] %v658
  %675 = vst [vmem:[%s5 + $0x30] sm:$0xff] %v659
  %676 = vst [vmem:[%s5 + $0x38] sm:$0xff] %v660
  %677 = vst [vmem:[%s5 + $0x40] sm:$0xff] %v661
  %678 = vst [vmem:[%s5 + $0x48] sm:$0xff] %v662
  %679 = vst [vmem:[%s5 + $0x50] sm:$0xff] %v663
  %680 = vst [vmem:[%s5 + $0x58] sm:$0xff] %v664
  %681 = vst [vmem:[%s5 + $0x60] sm:$0xff] %v665
  %682 = vst [vmem:[%s5 + $0x68] sm:$0xff] %v666
  %683 = vst [vmem:[%s5 + $0x70] sm:$0xff] %v667
  %684 = vst [vmem:[%s5 + $0x78] sm:$0xff] %v668
  // Predicated region
  $region22: #{_ffnn_call.1} parent=0 // pred_check
    _
  $region23: #{_ffnn_call.1} parent=0 // pred_check_branch
    %686 = sbr.rel (0) target = $region25
  $region24: #{_ffnn_call.1} parent=0 // pred_region
    _
  $region25: #{_ffnn_call.1} parent=0 // pred_fallthru
    _
  // Predicated region
  $region26: #{_ffnn_call.1} parent=0 // pred_check
    _
  $region27: #{_ffnn_call.1} parent=0 // pred_check_branch
    %688 = sbr.rel (0) target = $region29
  $region28: #{_ffnn_call.1} parent=0 // pred_region
    _
  $region29: #{_ffnn_call.1} parent=0 // pred_fallthru
    _

// kernel: _ffnn_call.1
$region0: #{_ffnn_call.1}
  #allocation0 [shape = 'u32[]', space=smem, size = 0x4, offset = 0x4, fixed_abs, tag = 'smem constant byte address 0x4 - core index']
  #allocation1 [shape = 'u32[144,128]{1,0:T(1,128)}', space=vmem, size = 0x12000, scoped, tag = 'internal scratch']
  %s0 = inlined_call_operand.vmem [shape: bf16[128,128], index: 0, kind: input, shape index: {}]
  %s1 = inlined_call_operand.vmem [shape: bf16[128,128], index: 1, kind: input, shape index: {}]
  %s2 = inlined_call_operand.vmem [shape: f32[1,128], index: 2, kind: input, shape index: {}]
  %s3 = inlined_call_operand.vmem [shape: bf16[128,128], index: 3, kind: input, shape index: {}]
  %s4 = inlined_call_operand.vmem [shape: f32[1,128], index: 4, kind: input, shape index: {}]
  %s5 = inlined_call_operand.vmem [shape: f32[128,128], index: 5, kind: output, shape index: {}]
  %s6 = sld [smem:[#allocation0]]
  $region30: #{_ffnn_call.1} parent=0
    _
  %s8 = ssub.s32 1, %s6
  %s9 = scalar_select 0, %s8, %s6
  // Predicated region
  $region2: #{_ffnn_call.1} parent=0 // pred_check
    _
  $region3: #{_ffnn_call.1} parent=0 // pred_check_branch
    %11 = sbr.rel (0) target = $region5
  $region4: #{_ffnn_call.1} parent=0 // pred_region
    _
  $region5: #{_ffnn_call.1} parent=0 // pred_fallthru
    _
  // Predicated region
  $region6: #{_ffnn_call.1} parent=0 // pred_check
    _
  $region7: #{_ffnn_call.1} parent=0 // pred_check_branch
    %13 = sbr.rel (0) target = $region9
  $region8: #{_ffnn_call.1} parent=0 // pred_region
    _
  $region9: #{_ffnn_call.1} parent=0 // pred_fallthru
    _
  // Predicated region
  $region10: #{_ffnn_call.1} parent=0 // pred_check
    _
  $region11: #{_ffnn_call.1} parent=0 // pred_check_branch
    %15 = sbr.rel (0) target = $region13
  $region12: #{_ffnn_call.1} parent=0 // pred_region
    _
  $region13: #{_ffnn_call.1} parent=0 // pred_fallthru
    _
  // Predicated region
  $region14: #{_ffnn_call.1} parent=0 // pred_check
    _
  $region15: #{_ffnn_call.1} parent=0 // pred_check_branch
    %17 = sbr.rel (0) target = $region17
  $region16: #{_ffnn_call.1} parent=0 // pred_region
    _
  $region17: #{_ffnn_call.1} parent=0 // pred_fallthru
    _
  // Predicated region
  $region18: #{_ffnn_call.1} parent=0 // pred_check
    _
  $region19: #{_ffnn_call.1} parent=0 // pred_check_branch
    %19 = sbr.rel (0) target = $region21
  $region20: #{_ffnn_call.1} parent=0 // pred_region
    _
  $region21: #{_ffnn_call.1} parent=0 // pred_fallthru
    _
  %v21 = vld [vmem:[%s0] sm:$0xf]
  %v22 = vld [vmem:[%s0 + $0x4] sm:$0xf]
  %v23 = vld [vmem:[%s0 + $0x8] sm:$0xf]
  %v24 = vld [vmem:[%s0 + $0xc] sm:$0xf]
  %v25 = vld [vmem:[%s0 + $0x10] sm:$0xf]
  %v26 = vld [vmem:[%s0 + $0x14] sm:$0xf]
  %v27 = vld [vmem:[%s0 + $0x18] sm:$0xf]
  %v28 = vld [vmem:[%s0 + $0x1c] sm:$0xf]
  %v29 = vld [vmem:[%s0 + $0x20] sm:$0xf]
  %v30 = vld [vmem:[%s0 + $0x24] sm:$0xf]
  %v31 = vld [vmem:[%s0 + $0x28] sm:$0xf]
  %v32 = vld [vmem:[%s0 + $0x2c] sm:$0xf]
  %v33 = vld [vmem:[%s0 + $0x30] sm:$0xf]
  %v34 = vld [vmem:[%s0 + $0x34] sm:$0xf]
  %v35 = vld [vmem:[%s0 + $0x38] sm:$0xf]
  %v36 = vld [vmem:[%s0 + $0x3c] sm:$0xf]
  %v37 = vld [vmem:[%s1] sm:$0xf]
  %v38 = vld [vmem:[%s1 + $0x4] sm:$0xf]
  %v39 = vld [vmem:[%s1 + $0x8] sm:$0xf]
  %v40 = vld [vmem:[%s1 + $0xc] sm:$0xf]
  %v41 = vld [vmem:[%s1 + $0x10] sm:$0xf]
  %v42 = vld [vmem:[%s1 + $0x14] sm:$0xf]
  %v43 = vld [vmem:[%s1 + $0x18] sm:$0xf]
  %v44 = vld [vmem:[%s1 + $0x1c] sm:$0xf]
  %v45 = vld [vmem:[%s1 + $0x20] sm:$0xf]
  %v46 = vld [vmem:[%s1 + $0x24] sm:$0xf]
  %v47 = vld [vmem:[%s1 + $0x28] sm:$0xf]
  %v48 = vld [vmem:[%s1 + $0x2c] sm:$0xf]
  %v49 = vld [vmem:[%s1 + $0x30] sm:$0xf]
  %v50 = vld [vmem:[%s1 + $0x34] sm:$0xf]
  %v51 = vld [vmem:[%s1 + $0x38] sm:$0xf]
  %v52 = vld [vmem:[%s1 + $0x3c] sm:$0xf]
  %v53 = vld [vmem:[%s2] sm:$0x1]
  %v55 = vlaneseq
  %v56 = vshrl.u32 %v55, 7
  %v57 = vsub.s32 0, %v56
  %v58 = vrot.slane %v53, %v57
  %v76 = vunpack.c.l.b16 %v21
  %v77 = vunpack.c.l.b16 %v22
  %v78 = vunpack.c.l.b16 %v23
  %v79 = vunpack.c.l.b16 %v24
  %v80 = vunpack.c.l.b16 %v25
  %v81 = vunpack.c.l.b16 %v26
  %v82 = vunpack.c.l.b16 %v27
  %v83 = vunpack.c.l.b16 %v28
  %v84 = vunpack.c.l.b16 %v29
  %v85 = vunpack.c.l.b16 %v30
  %v86 = vunpack.c.l.b16 %v31
  %v87 = vunpack.c.l.b16 %v32
  %v88 = vunpack.c.l.b16 %v33
  %v89 = vunpack.c.l.b16 %v34
  %v90 = vunpack.c.l.b16 %v35
  %v91 = vunpack.c.l.b16 %v36
  %v92 = vpack.c.b16 %v77, %v76
  %v93 = vpack.c.b16 %v79, %v78
  %v94 = vpack.c.b16 %v81, %v80
  %v95 = vpack.c.b16 %v83, %v82
  %v96 = vpack.c.b16 %v85, %v84
  %v97 = vpack.c.b16 %v87, %v86
  %v98 = vpack.c.b16 %v89, %v88
  %v99 = vpack.c.b16 %v91, %v90
  %v124 = vunpack.c.l.b16 %v37
  %v125 = vunpack.c.l.b16 %v38
  %v126 = vunpack.c.l.b16 %v39
  %v127 = vunpack.c.l.b16 %v40
  %v128 = vunpack.c.l.b16 %v41
  %v129 = vunpack.c.l.b16 %v42
  %v130 = vunpack.c.l.b16 %v43
  %v131 = vunpack.c.l.b16 %v44
  %v132 = vunpack.c.l.b16 %v45
  %v133 = vunpack.c.l.b16 %v46
  %v134 = vunpack.c.l.b16 %v47
  %v135 = vunpack.c.l.b16 %v48
  %v136 = vunpack.c.l.b16 %v49
  %v137 = vunpack.c.l.b16 %v50
  %v138 = vunpack.c.l.b16 %v51
  %v139 = vunpack.c.l.b16 %v52
  %v140 = vpack.c.b16 %v125, %v124
  %v141 = vpack.c.b16 %v127, %v126
  %v142 = vpack.c.b16 %v129, %v128
  %v143 = vpack.c.b16 %v131, %v130
  %v144 = vpack.c.b16 %v133, %v132
  %v145 = vpack.c.b16 %v135, %v134
  %v146 = vpack.c.b16 %v137, %v136
  %v147 = vpack.c.b16 %v139, %v138
  %156 = vmatprep.subr.bf16.mxu0 0
  %157 = vmatpush1.bf16.msra.mxu0 %v140
  %158 = vmatprep.subr.bf16.mxu0 0
  %159 = vmatpush1.bf16.msra.mxu0 %v141
  %160 = vmatprep.subr.bf16.mxu0 0
  %161 = vmatpush1.bf16.msra.mxu0 %v142
  %162 = vmatprep.subr.bf16.mxu0 0
  %163 = vmatpush1.bf16.msra.mxu0 %v143
  %164 = vmatprep.subr.bf16.mxu0 0
  %165 = vmatpush1.bf16.msra.mxu0 %v144
  %166 = vmatprep.subr.bf16.mxu0 0
  %167 = vmatpush1.bf16.msra.mxu0 %v145
  %168 = vmatprep.subr.bf16.mxu0 0
  %169 = vmatpush1.bf16.msra.mxu0 %v146
  %170 = vmatprep.subr.bf16.mxu0 0
  %171 = vmatpush1.bf16.msra.mxu0 %v147
  %172 = vmatprep.subr.bf16.mxu0 0
  %173 = vmatpush1.bf16.msra.mxu0 0
  %174 = vmatprep.subr.bf16.mxu0 0
  %175 = vmatpush1.bf16.msra.mxu0 0
  %176 = vmatprep.subr.bf16.mxu0 0
  %177 = vmatpush1.bf16.msra.mxu0 0
  %178 = vmatprep.subr.bf16.mxu0 0
  %179 = vmatpush1.bf16.msra.mxu0 0
  %180 = vmatprep.subr.bf16.mxu0 0
  %181 = vmatpush1.bf16.msra.mxu0 0
  %182 = vmatprep.subr.bf16.mxu0 0
  %183 = vmatpush1.bf16.msra.mxu0 0
  %184 = vmatprep.subr.bf16.mxu0 0
  %185 = vmatpush1.bf16.msra.mxu0 0
  %186 = vmatprep.subr.bf16.mxu0 0
  %187 = vmatpush1.bf16.msra.mxu0 0
  %188 = vmatprep.mubr.bf16.mxu0 0
  %189 = vmatmul.mubr.bf16.gmra.mrb[0].mxu0 %v92
  %v190 = vpop.f32.mrb[0].mxu0
  %v191 = vadd.f32 %v58, %v190
  %v192 = vpop.f32.mrb[0].mxu0
  %v193 = vpop.f32.mrb[0].mxu0
  %v194 = vadd.f32 %v58, %v193
  %v195 = vpop.f32.mrb[0].mxu0
  %196 = vmatprep.mubr.bf16.mxu0 0
  %197 = vmatmul.mubr.bf16.gmra.mrb[0].mxu0 %v93
  %v198 = vpop.f32.mrb[0].mxu0
  %v199 = vadd.f32 %v58, %v198
  %v200 = vpop.f32.mrb[0].mxu0
  %v201 = vpop.f32.mrb[0].mxu0
  %v202 = vadd.f32 %v58, %v201
  %v203 = vpop.f32.mrb[0].mxu0
  %204 = vmatprep.mubr.bf16.mxu0 0
  %205 = vmatmul.mubr.bf16.gmra.mrb[0].mxu0 %v94
  %v206 = vpop.f32.mrb[0].mxu0
  %v207 = vadd.f32 %v58, %v206
  %v208 = vpop.f32.mrb[0].mxu0
  %v209 = vpop.f32.mrb[0].mxu0
  %v210 = vadd.f32 %v58, %v209
  %v211 = vpop.f32.mrb[0].mxu0
  %212 = vmatprep.mubr.bf16.mxu0 0
  %213 = vmatmul.mubr.bf16.gmra.mrb[0].mxu0 %v95
  %v214 = vpop.f32.mrb[0].mxu0
  %v215 = vadd.f32 %v58, %v214
  %v216 = vpop.f32.mrb[0].mxu0
  %v217 = vpop.f32.mrb[0].mxu0
  %v218 = vadd.f32 %v58, %v217
  %v219 = vpop.f32.mrb[0].mxu0
  %220 = vmatprep.mubr.bf16.mxu0 0
  %221 = vmatmul.mubr.bf16.gmra.mrb[0].mxu0 %v96
  %v222 = vpop.f32.mrb[0].mxu0
  %v223 = vadd.f32 %v58, %v222
  %v224 = vpop.f32.mrb[0].mxu0
  %v225 = vpop.f32.mrb[0].mxu0
  %v226 = vadd.f32 %v58, %v225
  %v227 = vpop.f32.mrb[0].mxu0
  %228 = vmatprep.mubr.bf16.mxu0 0
  %229 = vmatmul.mubr.bf16.gmra.mrb[0].mxu0 %v97
  %v230 = vpop.f32.mrb[0].mxu0
  %v231 = vadd.f32 %v58, %v230
  %v232 = vpop.f32.mrb[0].mxu0
  %v233 = vpop.f32.mrb[0].mxu0
  %v234 = vadd.f32 %v58, %v233
  %v235 = vpop.f32.mrb[0].mxu0
  %236 = vmatprep.mubr.bf16.mxu0 0
  %237 = vmatmul.mubr.bf16.gmra.mrb[0].mxu0 %v98
  %v238 = vpop.f32.mrb[0].mxu0
  %v239 = vadd.f32 %v58, %v238
  %v240 = vpop.f32.mrb[0].mxu0
  %v241 = vpop.f32.mrb[0].mxu0
  %v242 = vadd.f32 %v58, %v241
  %v243 = vpop.f32.mrb[0].mxu0
  %244 = vmatprep.mubr.bf16.mxu0 0
  %245 = vmatmul.mubr.bf16.gmra.mrb[0].mxu0 %v99
  %v246 = vpop.f32.mrb[0].mxu0
  %v247 = vadd.f32 %v58, %v246
  %v248 = vpop.f32.mrb[0].mxu0
  %v249 = vpop.f32.mrb[0].mxu0
  %v250 = vadd.f32 %v58, %v249
  %v251 = vpop.f32.mrb[0].mxu0
  %252 = vdwg.mxu0
  %v253 = vmul.f32 %v191, 0.5
  %v254 = vmul.f32 %v194, 0.5
  %v255 = vmul.f32 %v199, 0.5
  %v256 = vmul.f32 %v202, 0.5
  %v257 = vmul.f32 %v207, 0.5
  %v258 = vmul.f32 %v210, 0.5
  %v259 = vmul.f32 %v215, 0.5
  %v260 = vmul.f32 %v218, 0.5
  %v261 = vmul.f32 %v223, 0.5
  %v262 = vmul.f32 %v226, 0.5
  %v263 = vmul.f32 %v231, 0.5
  %v264 = vmul.f32 %v234, 0.5
  %v265 = vmul.f32 %v239, 0.5
  %v266 = vmul.f32 %v242, 0.5
  %v267 = vmul.f32 %v247, 0.5
  %v268 = vmul.f32 %v250, 0.5
  %v269 = vmul.f32 %v191, 0.70710677
  %v270 = vmul.f32 %v194, 0.70710677
  %v271 = vmul.f32 %v199, 0.70710677
  %v272 = vmul.f32 %v202, 0.70710677
  %v273 = vmul.f32 %v207, 0.70710677
  %v274 = vmul.f32 %v210, 0.70710677
  %v275 = vmul.f32 %v215, 0.70710677
  %v276 = vmul.f32 %v218, 0.70710677
  %v277 = vmul.f32 %v223, 0.70710677
  %v278 = vmul.f32 %v226, 0.70710677
  %v279 = vmul.f32 %v231, 0.70710677
  %v280 = vmul.f32 %v234, 0.70710677
  %v281 = vmul.f32 %v239, 0.70710677
  %v282 = vmul.f32 %v242, 0.70710677
  %v283 = vmul.f32 %v247, 0.70710677
  %v284 = vmul.f32 %v250, 0.70710677
  %v285 = verf.f32.pop %v269
  %v286 = verf.f32.pop %v270
  %v287 = verf.f32.pop %v271
  %v288 = verf.f32.pop %v272
  %v289 = verf.f32.pop %v273
  %v290 = verf.f32.pop %v274
  %v291 = verf.f32.pop %v275
  %v292 = verf.f32.pop %v276
  %v293 = verf.f32.pop %v277
  %v294 = verf.f32.pop %v278
  %v295 = verf.f32.pop %v279
  %v296 = verf.f32.pop %v280
  %v297 = verf.f32.pop %v281
  %v298 = verf.f32.pop %v282
  %v299 = verf.f32.pop %v283
  %v300 = verf.f32.pop %v284
  %v301 = vadd.f32 %v285, 1.0
  %v302 = vadd.f32 %v286, 1.0
  %v303 = vadd.f32 %v287, 1.0
  %v304 = vadd.f32 %v288, 1.0
  %v305 = vadd.f32 %v289, 1.0
  %v306 = vadd.f32 %v290, 1.0
  %v307 = vadd.f32 %v291, 1.0
  %v308 = vadd.f32 %v292, 1.0
  %v309 = vadd.f32 %v293, 1.0
  %v310 = vadd.f32 %v294, 1.0
  %v311 = vadd.f32 %v295, 1.0
  %v312 = vadd.f32 %v296, 1.0
  %v313 = vadd.f32 %v297, 1.0
  %v314 = vadd.f32 %v298, 1.0
  %v315 = vadd.f32 %v299, 1.0
  %v316 = vadd.f32 %v300, 1.0
  %v317 = vmul.f32 %v253, %v301
  %v318 = vmul.f32 %v254, %v302
  %v319 = vmul.f32 %v255, %v303
  %v320 = vmul.f32 %v256, %v304
  %v321 = vmul.f32 %v257, %v305
  %v322 = vmul.f32 %v258, %v306
  %v323 = vmul.f32 %v259, %v307
  %v324 = vmul.f32 %v260, %v308
  %v325 = vmul.f32 %v261, %v309
  %v326 = vmul.f32 %v262, %v310
  %v327 = vmul.f32 %v263, %v311
  %v328 = vmul.f32 %v264, %v312
  %v329 = vmul.f32 %v265, %v313
  %v330 = vmul.f32 %v266, %v314
  %v331 = vmul.f32 %v267, %v315
  %v332 = vmul.f32 %v268, %v316
  %v333 = vpack.c.bf16 %v318, %v317
  %v334 = vpack.c.bf16 %v320, %v319
  %v335 = vpack.c.bf16 %v322, %v321
  %v336 = vpack.c.bf16 %v324, %v323
  %v337 = vpack.c.bf16 %v326, %v325
  %v338 = vpack.c.bf16 %v328, %v327
  %v339 = vpack.c.bf16 %v330, %v329
  %v340 = vpack.c.bf16 %v332, %v331
  %v341 = vld [vmem:[%s3] sm:$0xf]
  %v342 = vld [vmem:[%s3 + $0x4] sm:$0xf]
  %v343 = vld [vmem:[%s3 + $0x8] sm:$0xf]
  %v344 = vld [vmem:[%s3 + $0xc] sm:$0xf]
  %v345 = vld [vmem:[%s3 + $0x10] sm:$0xf]
  %v346 = vld [vmem:[%s3 + $0x14] sm:$0xf]
  %v347 = vld [vmem:[%s3 + $0x18] sm:$0xf]
  %v348 = vld [vmem:[%s3 + $0x1c] sm:$0xf]
  %v349 = vld [vmem:[%s3 + $0x20] sm:$0xf]
  %v350 = vld [vmem:[%s3 + $0x24] sm:$0xf]
  %v351 = vld [vmem:[%s3 + $0x28] sm:$0xf]
  %v352 = vld [vmem:[%s3 + $0x2c] sm:$0xf]
  %v353 = vld [vmem:[%s3 + $0x30] sm:$0xf]
  %v354 = vld [vmem:[%s3 + $0x34] sm:$0xf]
  %v355 = vld [vmem:[%s3 + $0x38] sm:$0xf]
  %v356 = vld [vmem:[%s3 + $0x3c] sm:$0xf]
  %v357 = vld [vmem:[%s4] sm:$0x1]
  %v359 = vlaneseq
  %v360 = vshrl.u32 %v359, 7
  %v361 = vsub.s32 0, %v360
  %v362 = vrot.slane %v357, %v361
  %v380 = vunpack.c.l.b16 %v341
  %v381 = vunpack.c.l.b16 %v342
  %v382 = vunpack.c.l.b16 %v343
  %v383 = vunpack.c.l.b16 %v344
  %v384 = vunpack.c.l.b16 %v345
  %v385 = vunpack.c.l.b16 %v346
  %v386 = vunpack.c.l.b16 %v347
  %v387 = vunpack.c.l.b16 %v348
  %v388 = vunpack.c.l.b16 %v349
  %v389 = vunpack.c.l.b16 %v350
  %v390 = vunpack.c.l.b16 %v351
  %v391 = vunpack.c.l.b16 %v352
  %v392 = vunpack.c.l.b16 %v353
  %v393 = vunpack.c.l.b16 %v354
  %v394 = vunpack.c.l.b16 %v355
  %v395 = vunpack.c.l.b16 %v356
  %v396 = vpack.c.b16 %v381, %v380
  %v397 = vpack.c.b16 %v383, %v382
  %v398 = vpack.c.b16 %v385, %v384
  %v399 = vpack.c.b16 %v387, %v386
  %v400 = vpack.c.b16 %v389, %v388
  %v401 = vpack.c.b16 %v391, %v390
  %v402 = vpack.c.b16 %v393, %v392
  %v403 = vpack.c.b16 %v395, %v394
  %412 = vmatprep.subr.bf16.mxu0 0
  %413 = vmatpush1.bf16.msra.mxu0 %v396
  %414 = vmatprep.subr.bf16.mxu0 0
  %415 = vmatpush1.bf16.msra.mxu0 %v397
  %416 = vmatprep.subr.bf16.mxu0 0
  %417 = vmatpush1.bf16.msra.mxu0 %v398
  %418 = vmatprep.subr.bf16.mxu0 0
  %419 = vmatpush1.bf16.msra.mxu0 %v399
  %420 = vmatprep.subr.bf16.mxu0 0
  %421 = vmatpush1.bf16.msra.mxu0 %v400
  %422 = vmatprep.subr.bf16.mxu0 0
  %423 = vmatpush1.bf16.msra.mxu0 %v401
  %424 = vmatprep.subr.bf16.mxu0 0
  %425 = vmatpush1.bf16.msra.mxu0 %v402
  %426 = vmatprep.subr.bf16.mxu0 0
  %427 = vmatpush1.bf16.msra.mxu0 %v403
  %428 = vmatprep.subr.bf16.mxu0 0
  %429 = vmatpush1.bf16.msra.mxu0 0
  %430 = vmatprep.subr.bf16.mxu0 0
  %431 = vmatpush1.bf16.msra.mxu0 0
  %432 = vmatprep.subr.bf16.mxu0 0
  %433 = vmatpush1.bf16.msra.mxu0 0
  %434 = vmatprep.subr.bf16.mxu0 0
  %435 = vmatpush1.bf16.msra.mxu0 0
  %436 = vmatprep.subr.bf16.mxu0 0
  %437 = vmatpush1.bf16.msra.mxu0 0
  %438 = vmatprep.subr.bf16.mxu0 0
  %439 = vmatpush1.bf16.msra.mxu0 0
  %440 = vmatprep.subr.bf16.mxu0 0
  %441 = vmatpush1.bf16.msra.mxu0 0
  %442 = vmatprep.subr.bf16.mxu0 0
  %443 = vmatpush1.bf16.msra.mxu0 0
  %444 = vmatprep.mubr.bf16.mxu0 0
  %445 = vmatmul.mubr.bf16.gmra.mrb[0].mxu0 %v333
  %v446 = vpop.f32.mrb[0].mxu0
  %v447 = vadd.f32 %v362, %v446
  %v448 = vpop.f32.mrb[0].mxu0
  %v449 = vpop.f32.mrb[0].mxu0
  %v450 = vadd.f32 %v362, %v449
  %v451 = vpop.f32.mrb[0].mxu0
  %452 = vmatprep.mubr.bf16.mxu0 0
  %453 = vmatmul.mubr.bf16.gmra.mrb[0].mxu0 %v334
  %v454 = vpop.f32.mrb[0].mxu0
  %v455 = vadd.f32 %v362, %v454
  %v456 = vpop.f32.mrb[0].mxu0
  %v457 = vpop.f32.mrb[0].mxu0
  %v458 = vadd.f32 %v362, %v457
  %v459 = vpop.f32.mrb[0].mxu0
  %460 = vmatprep.mubr.bf16.mxu0 0
  %461 = vmatmul.mubr.bf16.gmra.mrb[0].mxu0 %v335
  %v462 = vpop.f32.mrb[0].mxu0
  %v463 = vadd.f32 %v362, %v462
  %v464 = vpop.f32.mrb[0].mxu0
  %v465 = vpop.f32.mrb[0].mxu0
  %v466 = vadd.f32 %v362, %v465
  %v467 = vpop.f32.mrb[0].mxu0
  %468 = vmatprep.mubr.bf16.mxu0 0
  %469 = vmatmul.mubr.bf16.gmra.mrb[0].mxu0 %v336
  %v470 = vpop.f32.mrb[0].mxu0
  %v471 = vadd.f32 %v362, %v470
  %v472 = vpop.f32.mrb[0].mxu0
  %v473 = vpop.f32.mrb[0].mxu0
  %v474 = vadd.f32 %v362, %v473
  %v475 = vpop.f32.mrb[0].mxu0
  %476 = vmatprep.mubr.bf16.mxu0 0
  %477 = vmatmul.mubr.bf16.gmra.mrb[0].mxu0 %v337
  %v478 = vpop.f32.mrb[0].mxu0
  %v479 = vadd.f32 %v362, %v478
  %v480 = vpop.f32.mrb[0].mxu0
  %v481 = vpop.f32.mrb[0].mxu0
  %v482 = vadd.f32 %v362, %v481
  %v483 = vpop.f32.mrb[0].mxu0
  %484 = vmatprep.mubr.bf16.mxu0 0
  %485 = vmatmul.mubr.bf16.gmra.mrb[0].mxu0 %v338
  %v486 = vpop.f32.mrb[0].mxu0
  %v487 = vadd.f32 %v362, %v486
  %v488 = vpop.f32.mrb[0].mxu0
  %v489 = vpop.f32.mrb[0].mxu0
  %v490 = vadd.f32 %v362, %v489
  %v491 = vpop.f32.mrb[0].mxu0
  %492 = vmatprep.mubr.bf16.mxu0 0
  %493 = vmatmul.mubr.bf16.gmra.mrb[0].mxu0 %v339
  %v494 = vpop.f32.mrb[0].mxu0
  %v495 = vadd.f32 %v362, %v494
  %v496 = vpop.f32.mrb[0].mxu0
  %v497 = vpop.f32.mrb[0].mxu0
  %v498 = vadd.f32 %v362, %v497
  %v499 = vpop.f32.mrb[0].mxu0
  %500 = vmatprep.mubr.bf16.mxu0 0
  %501 = vmatmul.mubr.bf16.gmra.mrb[0].mxu0 %v340
  %v502 = vpop.f32.mrb[0].mxu0
  %v503 = vadd.f32 %v362, %v502
  %v504 = vpop.f32.mrb[0].mxu0
  %v505 = vpop.f32.mrb[0].mxu0
  %v506 = vadd.f32 %v362, %v505
  %v507 = vpop.f32.mrb[0].mxu0
  %508 = vdwg.mxu0
  %509 = vmax.xlane.f32.xlu0 %v447
  %v510 = vpop.xlane.xlu0 %509
  %511 = vmax.xlane.f32.xlu0 %v450
  %v512 = vpop.xlane.xlu0 %511
  %513 = vmax.xlane.f32.xlu0 %v455
  %v514 = vpop.xlane.xlu0 %513
  %515 = vmax.xlane.f32.xlu0 %v458
  %v516 = vpop.xlane.xlu0 %515
  %517 = vmax.xlane.f32.xlu0 %v463
  %v518 = vpop.xlane.xlu0 %517
  %519 = vmax.xlane.f32.xlu0 %v466
  %v520 = vpop.xlane.xlu0 %519
  %521 = vmax.xlane.f32.xlu0 %v471
  %v522 = vpop.xlane.xlu0 %521
  %523 = vmax.xlane.f32.xlu0 %v474
  %v524 = vpop.xlane.xlu0 %523
  %525 = vmax.xlane.f32.xlu0 %v479
  %v526 = vpop.xlane.xlu0 %525
  %527 = vmax.xlane.f32.xlu0 %v482
  %v528 = vpop.xlane.xlu0 %527
  %529 = vmax.xlane.f32.xlu0 %v487
  %v530 = vpop.xlane.xlu0 %529
  %531 = vmax.xlane.f32.xlu0 %v490
  %v532 = vpop.xlane.xlu0 %531
  %533 = vmax.xlane.f32.xlu0 %v495
  %v534 = vpop.xlane.xlu0 %533
  %535 = vmax.xlane.f32.xlu0 %v498
  %v536 = vpop.xlane.xlu0 %535
  %537 = vmax.xlane.f32.xlu0 %v503
  %v538 = vpop.xlane.xlu0 %537
  %539 = vmax.xlane.f32.xlu0 %v506
  %v540 = vpop.xlane.xlu0 %539
  %v541 = vsub.f32 %v447, %v510
  %v542 = vsub.f32 %v450, %v512
  %v543 = vsub.f32 %v455, %v514
  %v544 = vsub.f32 %v458, %v516
  %v545 = vsub.f32 %v463, %v518
  %v546 = vsub.f32 %v466, %v520
  %v547 = vsub.f32 %v471, %v522
  %v548 = vsub.f32 %v474, %v524
  %v549 = vsub.f32 %v479, %v526
  %v550 = vsub.f32 %v482, %v528
  %v551 = vsub.f32 %v487, %v530
  %v552 = vsub.f32 %v490, %v532
  %v553 = vsub.f32 %v495, %v534
  %v554 = vsub.f32 %v498, %v536
  %v555 = vsub.f32 %v503, %v538
  %v556 = vsub.f32 %v506, %v540
  %v557 = vmul.f32 %v541, 1.442695
  %v558 = vpow.pop %v557
  %v559 = vmul.f32 %v542, 1.442695
  %v560 = vpow.pop %v559
  %v561 = vmul.f32 %v543, 1.442695
  %v562 = vpow.pop %v561
  %v563 = vmul.f32 %v544, 1.442695
  %v564 = vpow.pop %v563
  %v565 = vmul.f32 %v545, 1.442695
  %v566 = vpow.pop %v565
  %v567 = vmul.f32 %v546, 1.442695
  %v568 = vpow.pop %v567
  %v569 = vmul.f32 %v547, 1.442695
  %v570 = vpow.pop %v569
  %v571 = vmul.f32 %v548, 1.442695
  %v572 = vpow.pop %v571
  %v573 = vmul.f32 %v549, 1.442695
  %v574 = vpow.pop %v573
  %v575 = vmul.f32 %v550, 1.442695
  %v576 = vpow.pop %v575
  %v577 = vmul.f32 %v551, 1.442695
  %v578 = vpow.pop %v577
  %v579 = vmul.f32 %v552, 1.442695
  %v580 = vpow.pop %v579
  %v581 = vmul.f32 %v553, 1.442695
  %v582 = vpow.pop %v581
  %v583 = vmul.f32 %v554, 1.442695
  %v584 = vpow.pop %v583
  %v585 = vmul.f32 %v555, 1.442695
  %v586 = vpow.pop %v585
  %v587 = vmul.f32 %v556, 1.442695
  %v588 = vpow.pop %v587
  %589 = vadd.xlane.f32.xlu0 %v558
  %v590 = vpop.xlane.xlu0 %589
  %591 = vadd.xlane.f32.xlu0 %v560
  %v592 = vpop.xlane.xlu0 %591
  %593 = vadd.xlane.f32.xlu0 %v562
  %v594 = vpop.xlane.xlu0 %593
  %595 = vadd.xlane.f32.xlu0 %v564
  %v596 = vpop.xlane.xlu0 %595
  %597 = vadd.xlane.f32.xlu0 %v566
  %v598 = vpop.xlane.xlu0 %597
  %599 = vadd.xlane.f32.xlu0 %v568
  %v600 = vpop.xlane.xlu0 %599
  %601 = vadd.xlane.f32.xlu0 %v570
  %v602 = vpop.xlane.xlu0 %601
  %603 = vadd.xlane.f32.xlu0 %v572
  %v604 = vpop.xlane.xlu0 %603
  %605 = vadd.xlane.f32.xlu0 %v574
  %v606 = vpop.xlane.xlu0 %605
  %607 = vadd.xlane.f32.xlu0 %v576
  %v608 = vpop.xlane.xlu0 %607
  %609 = vadd.xlane.f32.xlu0 %v578
  %v610 = vpop.xlane.xlu0 %609
  %611 = vadd.xlane.f32.xlu0 %v580
  %v612 = vpop.xlane.xlu0 %611
  %613 = vadd.xlane.f32.xlu0 %v582
  %v614 = vpop.xlane.xlu0 %613
  %615 = vadd.xlane.f32.xlu0 %v584
  %v616 = vpop.xlane.xlu0 %615
  %617 = vadd.xlane.f32.xlu0 %v586
  %v618 = vpop.xlane.xlu0 %617
  %619 = vadd.xlane.f32.xlu0 %v588
  %v620 = vpop.xlane.xlu0 %619
  %v621 = vlog2.pop %v590
  %v622 = vmul.f32 %v621, 0.6931472
  %v623 = vlog2.pop %v592
  %v624 = vmul.f32 %v623, 0.6931472
  %v625 = vlog2.pop %v594
  %v626 = vmul.f32 %v625, 0.6931472
  %v627 = vlog2.pop %v596
  %v628 = vmul.f32 %v627, 0.6931472
  %v629 = vlog2.pop %v598
  %v630 = vmul.f32 %v629, 0.6931472
  %v631 = vlog2.pop %v600
  %v632 = vmul.f32 %v631, 0.6931472
  %v633 = vlog2.pop %v602
  %v634 = vmul.f32 %v633, 0.6931472
  %v635 = vlog2.pop %v604
  %v636 = vmul.f32 %v635, 0.6931472
  %v637 = vlog2.pop %v606
  %v638 = vmul.f32 %v637, 0.6931472
  %v639 = vlog2.pop %v608
  %v640 = vmul.f32 %v639, 0.6931472
  %v641 = vlog2.pop %v610
  %v642 = vmul.f32 %v641, 0.6931472
  %v643 = vlog2.pop %v612
  %v644 = vmul.f32 %v643, 0.6931472
  %v645 = vlog2.pop %v614
  %v646 = vmul.f32 %v645, 0.6931472
  %v647 = vlog2.pop %v616
  %v648 = vmul.f32 %v647, 0.6931472
  %v649 = vlog2.pop %v618
  %v650 = vmul.f32 %v649, 0.6931472
  %v651 = vlog2.pop %v620
  %v652 = vmul.f32 %v651, 0.6931472
  %v653 = vsub.f32 %v541, %v622
  %v654 = vsub.f32 %v542, %v624
  %v655 = vsub.f32 %v543, %v626
  %v656 = vsub.f32 %v544, %v628
  %v657 = vsub.f32 %v545, %v630
  %v658 = vsub.f32 %v546, %v632
  %v659 = vsub.f32 %v547, %v634
  %v660 = vsub.f32 %v548, %v636
  %v661 = vsub.f32 %v549, %v638
  %v662 = vsub.f32 %v550, %v640
  %v663 = vsub.f32 %v551, %v642
  %v664 = vsub.f32 %v552, %v644
  %v665 = vsub.f32 %v553, %v646
  %v666 = vsub.f32 %v554, %v648
  %v667 = vsub.f32 %v555, %v650
  %v668 = vsub.f32 %v556, %v652
  %669 = vst [vmem:[%s5] sm:$0xff] %v653
  %670 = vst [vmem:[%s5 + $0x8] sm:$0xff] %v654
  %671 = vst [vmem:[%s5 + $0x10] sm:$0xff] %v655
  %672 = vst [vmem:[%s5 + $0x18] sm:$0xff] %v656
  %673 = vst [vmem:[%s5 + $0x20] sm:$0xff] %v657
  %674 = vst [vmem:[%s5 + $0x28] sm:$0xff] %v658
  %675 = vst [vmem:[%s5 + $0x30] sm:$0xff] %v659
  %676 = vst [vmem:[%s5 + $0x38] sm:$0xff] %v660
  %677 = vst [vmem:[%s5 + $0x40] sm:$0xff] %v661
  %678 = vst [vmem:[%s5 + $0x48] sm:$0xff] %v662
  %679 = vst [vmem:[%s5 + $0x50] sm:$0xff] %v663
  %680 = vst [vmem:[%s5 + $0x58] sm:$0xff] %v664
  %681 = vst [vmem:[%s5 + $0x60] sm:$0xff] %v665
  %682 = vst [vmem:[%s5 + $0x68] sm:$0xff] %v666
  %683 = vst [vmem:[%s5 + $0x70] sm:$0xff] %v667
  %684 = vst [vmem:[%s5 + $0x78] sm:$0xff] %v668
  // Predicated region
  $region22: #{_ffnn_call.1} parent=0 // pred_check
    _
  $region23: #{_ffnn_call.1} parent=0 // pred_check_branch
    %686 = sbr.rel (0) target = $region25
  $region24: #{_ffnn_call.1} parent=0 // pred_region
    _
  $region25: #{_ffnn_call.1} parent=0 // pred_fallthru
    _
  // Predicated region
  $region26: #{_ffnn_call.1} parent=0 // pred_check
    _
  $region27: #{_ffnn_call.1} parent=0 // pred_check_branch
    %688 = sbr.rel (0) target = $region29
  $region28: #{_ffnn_call.1} parent=0 // pred_region
    _
  $region29: #{_ffnn_call.1} parent=0 // pred_fallthru
    _

</llo_original>
